<compile_context>
chip_gen: v6e
topology: v6e:2x2x1
jax: 0.10.0
libtpu: 0.0.40
codegen_flags: <defaults>
</compile_context>

<pallas_src>
import functools

import jax
import jax.numpy as jnp
import numpy as np
from jax import lax
from jax.experimental import pallas as pl
from jax.experimental.pallas import tpu as pltpu

C = 32                    # input_ch
NC = 8                    # num_classes
H = W = 14                # forced by LayerNorm([input_ch, 14, 14])
WP = 16                   # padded row pitch (lanes per image row)
HP = 18                   # padded rows: 1 top halo + 14 + 3 bottom slack/halo rows
RPS = HP * WP             # flattened padded pixels per sample = 288
NPIX = H * WP             # 224 computed pixel columns (w = 14, 15 are garbage, masked)
T2 = 128                  # conv2 pad-slab interior start lane (vreg aligned)
PAD2_W = T2 + NPIX + 32   # 384 >= T2 + 224 + 17 (max halo reach)
LN_EPS = 1e-5

# MXU operand dtype: bf16 operands, f32 accumulation.  LN / softmax stay f32.
MXU_DTYPE = jnp.bfloat16

# tap t = ky*3 + kx  ->  lane shift in the flattened slab
_TAP_OFFS = tuple(ky * WP + kx for ky in range(3) for kx in range(3))


def _adversery_kernel(x_ref, w1_ref, b1_ref, g_ref, be_ref, w2_ref, b2_ref, mask_ref,
                      out_ref, pad2_ref, *, bb):
    """Processes `bb` samples per grid step.

    x_ref   : (bb, C, 288) bf16  zero-padded, flattened channel-major input slabs
    w1_ref  : (9, C, C)    bf16  conv1 per-tap (O, I) matrices
    w2_ref  : (9, NC, C)   bf16  conv2 per-tap (O, I) matrices
    b1_ref  : (C, 1) f32,  b2_ref: (NC, 1) f32
    g_ref/be_ref : (C, 224) f32  LayerNorm affine params in flat-slab layout
    mask_ref: (1, 224) f32       1.0 where the pixel column is valid (w < 14)
    out_ref : (bb, NC, 224) f32  softmax probabilities (garbage cols dropped host-side)
    pad2_ref: (C, 384) bf16      VMEM scratch: re-padded conv2 input slab
    """
    # Zero only the halo lanes of the conv2 pad slab once per grid step; the 224
    # interior lanes [T2, T2+224) are fully rewritten for every sample.
    pad2_ref[:, 0:T2] = jnp.zeros((C, T2), MXU_DTYPE)
    pad2_ref[:, T2 + NPIX:] = jnp.zeros((C, PAD2_W - T2 - NPIX), MXU_DTYPE)

    inv_n = jnp.float32(1.0 / (H * W * C))

    def body(b, carry):
        xb = x_ref[b]                                   # (C, 288) bf16 (6 vregs)

        # ---- conv1: 9 lane-shifted (C, C) @ (C, 224) MXU matmuls, f32 accumulation --
        acc1 = jnp.zeros((C, NPIX), jnp.float32)
        for t, s in enumerate(_TAP_OFFS):
            acc1 = acc1 + jnp.dot(w1_ref[t], xb[:, s:s + NPIX],
                                  preferred_element_type=jnp.float32)
        acc1 = acc1 + b1_ref[...]                       # (C, 1) broadcast over lanes

        # ---- LayerNorm over this sample's (C,14,14) elements (single pass, f32) -----
        mask = mask_ref[...]                            # (1, 224), 0 at garbage cols
        am = acc1 * mask
        s1 = jnp.sum(am, axis=(0, 1), keepdims=True)            # (1, 1)
        s2 = jnp.sum(am * acc1, axis=(0, 1), keepdims=True)     # (1, 1) sum of x^2
        mean = s1 * inv_n
        var = s2 * inv_n - mean * mean
        y = (acc1 - mean) * lax.rsqrt(var + LN_EPS)
        y = jnp.maximum(y * g_ref[...] + be_ref[...], 0.0) * mask   # ReLU + zero garbage

        # ---- re-pad for conv2: interior lanes [128, 352), vreg-aligned store --------
        pad2_ref[:, T2:T2 + NPIX] = y.astype(MXU_DTYPE)
        yp = pad2_ref[...]                              # (C, 384) bf16 (6 vregs)

        # ---- conv2: 9 lane-shifted (NC, C) @ (C, 224) MXU matmuls --------------------
        acc2 = jnp.zeros((NC, NPIX), jnp.float32)
        for t, s in enumerate(_TAP_OFFS):
            c0 = T2 - (WP + 1) + s                      # = 111 + s, max end 369 <= 384
            acc2 = acc2 + jnp.dot(w2_ref[t], yp[:, c0:c0 + NPIX],
                                  preferred_element_type=jnp.float32)
        acc2 = acc2 + b2_ref[...]                       # (NC, 1)

        # ---- softmax over channels (sublane axis), exact divide ----------------------
        m = jnp.max(acc2, axis=0, keepdims=True)
        e = jnp.exp(acc2 - m)
        out_ref[b] = e / jnp.sum(e, axis=0, keepdims=True)
        return carry

    lax.fori_loop(0, bb, body, 0)


def _pick_bb(batch):
    """Largest batch tile (<= 16) dividing `batch`; prefer >=2 grid steps and an even
    grid (so v7x's two TensorCores both get work), then >=2 steps, then any divisor."""
    cands = [bb for bb in (16, 8, 4, 2, 1) if batch % bb == 0]
    for bb in cands:
        g = batch // bb
        if g >= 2 and g % 2 == 0:
            return bb
    for bb in cands:
        if batch // bb >= 2:
            return bb
    return cands[0]


@jax.jit
def single_adversery_forward(x_nchw, params):
    B = x_nchw.shape[0]
    assert x_nchw.shape[1:] == (C, H, W)
    BB = _pick_bb(B)
    G = B // BB

    # ---- host-side glue: zero-pad + flatten (channel-major, so no transposes) -------
    x_slab = jnp.pad(x_nchw, ((0, 0), (0, 0), (1, HP - H - 1), (1, 1)))
    x_slab = x_slab.reshape(B, C, RPS).astype(MXU_DTYPE)               # (B, C, 288)

    # conv weights (O, I, kh, kw) -> per-tap (O, I) matrices, tap index = ky*3 + kx
    w1_taps = jnp.transpose(params["w1"], (2, 3, 0, 1)).reshape(9, C, C).astype(MXU_DTYPE)
    w2_taps = jnp.transpose(params["w2"], (2, 3, 0, 1)).reshape(9, NC, C).astype(MXU_DTYPE)
    b1 = params["b1"].reshape(C, 1).astype(jnp.float32)
    b2 = params["b2"].reshape(NC, 1).astype(jnp.float32)
    g_flat = jnp.pad(params["gamma"], ((0, 0), (0, 0), (0, WP - W))).reshape(C, NPIX)
    be_flat = jnp.pad(params["beta"], ((0, 0), (0, 0), (0, WP - W))).reshape(C, NPIX)
    g_flat = g_flat.astype(jnp.float32)
    be_flat = be_flat.astype(jnp.float32)

    # validity mask over the 224 computed pixel columns (w_pad < 14)
    mask = (jnp.arange(NPIX, dtype=jnp.int32) % WP < W).astype(jnp.float32).reshape(1, NPIX)

    flops = 2 * B * NPIX * C * (C + NC) * 9
    transcendentals = B * NPIX * (NC + 1)
    bytes_accessed = (x_slab.size * x_slab.dtype.itemsize
                      + B * NC * NPIX * 4
                      + (w1_taps.size + w2_taps.size) * 2
                      + (g_flat.size + be_flat.size + mask.size + C + NC) * 4)

    out = pl.pallas_call(
        functools.partial(_adversery_kernel, bb=BB),
        out_shape=jax.ShapeDtypeStruct((B, NC, NPIX), jnp.float32),
        grid=(G,),
        in_specs=[
            pl.BlockSpec((BB, C, RPS), lambda g: (g, 0, 0)),      # x slabs (batch tile)
            pl.BlockSpec((9, C, C), lambda g: (0, 0, 0)),         # conv1 taps
            pl.BlockSpec((C, 1), lambda g: (0, 0)),               # b1
            pl.BlockSpec((C, NPIX), lambda g: (0, 0)),            # gamma (flat layout)
            pl.BlockSpec((C, NPIX), lambda g: (0, 0)),            # beta  (flat layout)
            pl.BlockSpec((9, NC, C), lambda g: (0, 0, 0)),        # conv2 taps
            pl.BlockSpec((NC, 1), lambda g: (0, 0)),              # b2
            pl.BlockSpec((1, NPIX), lambda g: (0, 0)),            # validity mask
        ],
        out_specs=pl.BlockSpec((BB, NC, NPIX), lambda g: (g, 0, 0)),
        scratch_shapes=[pltpu.VMEM((C, PAD2_W), MXU_DTYPE)],
        compiler_params=pltpu.CompilerParams(dimension_semantics=("parallel",)),
        cost_estimate=pl.CostEstimate(flops=int(flops),
                                      transcendentals=int(transcendentals),
                                      bytes_accessed=int(bytes_accessed)),
    )(x_slab, w1_taps, b1, g_flat, be_flat, w2_taps, b2, mask)

    # (B, NC, 224) -> (B, NC, 14, 16) -> drop garbage cols; already NCHW (no transpose)
    return out.reshape(B, NC, H, WP)[:, :, :, :W]


def reference_forward(x, params, match_kernel_bf16=False):
    """Pure-JAX reference of the PyTorch module.  With match_kernel_bf16=True the conv
    operands (inputs + weights) are rounded to bfloat16 exactly like the kernel's MXU
    operands (accumulation stays f32 in both), so a tight tolerance is valid."""
    def q(a):
        return a.astype(jnp.bfloat16).astype(jnp.float32) if match_kernel_bf16 else a
    dn = ("NCHW", "OIHW", "NCHW")
    y = lax.conv_general_dilated(q(x), q(params["w1"]), (1, 1), "SAME", dimension_numbers=dn)
    y = y + params["b1"][None, :, None, None]
    mean = jnp.mean(y, axis=(1, 2, 3), keepdims=True)
    var = jnp.mean((y - mean) ** 2, axis=(1, 2, 3), keepdims=True)
    y = (y - mean) * lax.rsqrt(var + LN_EPS)
    y = y * params["gamma"][None] + params["beta"][None]
    y = jnp.maximum(y, 0.0)
    y = lax.conv_general_dilated(q(y), q(params["w2"]), (1, 1), "SAME", dimension_numbers=dn)
    y = y + params["b2"][None, :, None, None]
    return jax.nn.softmax(y, axis=1)


if __name__ == "__main__":
    key = jax.random.PRNGKey(0)
    kx, k1, k2, k3, k4, k5, k6 = jax.random.split(key, 7)

    B = 2
    x = jax.random.normal(kx, (B, C, H, W), jnp.float32)

    params = {
        "w1": jax.random.normal(k1, (C, C, 3, 3), jnp.float32) * 0.05,
        "b1": jax.random.normal(k2, (C,), jnp.float32) * 0.05,
        "gamma": 1.0 + 0.1 * jax.random.normal(k3, (C, H, W), jnp.float32),
        "beta": 0.1 * jax.random.normal(k4, (C, H, W), jnp.float32),
        "w2": jax.random.normal(k5, (NC, C, 3, 3), jnp.float32) * 0.05,
        "b2": jax.random.normal(k6, (NC,), jnp.float32) * 0.05,
    }

    out = single_adversery_forward(x, params)
    jax.block_until_ready(out)
    assert out.shape == (B, NC, H, W)

    # Tight check vs a reference whose conv operands are rounded to bf16 exactly like
    # the kernel's MXU operands; remaining differences are f32 accumulation order only.
    ref_bf16 = reference_forward(x, params, match_kernel_bf16=True)
    np.testing.assert_allclose(np.array(out), np.array(ref_bf16), rtol=2e-3, atol=2e-4)

    # Loose sanity check vs the exact f32 module semantics (bf16 operand rounding only
    # perturbs these softmax probabilities at the ~1e-2 absolute level).
    ref_f32 = reference_forward(x, params, match_kernel_bf16=False)
    np.testing.assert_allclose(np.array(out), np.array(ref_f32), rtol=0.0, atol=6e-2)

    print("KERNEL_OK")
</pallas_src>

<mosaic_0001>
module attributes {stable_mosaic.version = 11 : i64} {
  func.func @_adversery_kernel(%arg0: i32, %arg1: memref<1x32x288xbf16, #tpu.memory_space<vmem>>, %arg2: memref<9x32x32xbf16, #tpu.memory_space<vmem>>, %arg3: memref<32x1xf32, #tpu.memory_space<vmem>>, %arg4: memref<32x224xf32, #tpu.memory_space<vmem>>, %arg5: memref<32x224xf32, #tpu.memory_space<vmem>>, %arg6: memref<9x8x32xbf16, #tpu.memory_space<vmem>>, %arg7: memref<8x1xf32, #tpu.memory_space<vmem>>, %arg8: memref<1x224xf32, #tpu.memory_space<vmem>>, %arg9: memref<1x8x224xf32, #tpu.memory_space<vmem>>, %arg10: memref<32x384xbf16, #tpu.memory_space<vmem>>) attributes {dimension_semantics = [#tpu.dimension_semantics<parallel>], iteration_bounds = array<i64: 2>, scalar_prefetch = 0 : i64, scratch_operands = 1 : i64, tpu.core_type = #tpu.core_type<tc>, window_params = [{transform_indices = @transform_0, window_bounds = array<i64: 1, 32, 288>}, {pipeline_mode = #tpu.pipeline_mode<synchronous>, transform_indices = @transform_1, window_bounds = array<i64: 9, 32, 32>}, {pipeline_mode = #tpu.pipeline_mode<synchronous>, transform_indices = @transform_2, window_bounds = array<i64: 32, 1>}, {pipeline_mode = #tpu.pipeline_mode<synchronous>, transform_indices = @transform_3, window_bounds = array<i64: 32, 224>}, {pipeline_mode = #tpu.pipeline_mode<synchronous>, transform_indices = @transform_4, window_bounds = array<i64: 32, 224>}, {pipeline_mode = #tpu.pipeline_mode<synchronous>, transform_indices = @transform_5, window_bounds = array<i64: 9, 8, 32>}, {pipeline_mode = #tpu.pipeline_mode<synchronous>, transform_indices = @transform_6, window_bounds = array<i64: 8, 1>}, {pipeline_mode = #tpu.pipeline_mode<synchronous>, transform_indices = @transform_7, window_bounds = array<i64: 1, 224>}, {transform_indices = @transform_8, window_bounds = array<i64: 1, 8, 224>}]} {
    %cst = arith.constant 0.000000e+00 : bf16
    %0 = vector.broadcast %cst : bf16 to vector<32x128xbf16>
    %c0 = arith.constant 0 : index
    %c0_0 = arith.constant 0 : index
    %1 = vector.load %arg10[%c0, %c0_0] : memref<32x384xbf16, #tpu.memory_space<vmem>>, vector<32x128xbf16>
    tpu.vector_store %arg10[%c0, %c0_0], %0 {strides = array<i32>} : memref<32x384xbf16, #tpu.memory_space<vmem>>, vector<32x128xbf16>,
    %cst_1 = arith.constant 0.000000e+00 : bf16
    %2 = vector.broadcast %cst_1 : bf16 to vector<32x32xbf16>
    %c0_2 = arith.constant 0 : index
    %c352 = arith.constant 352 : index
    %3 = vector.load %arg10[%c0_2, %c352] : memref<32x384xbf16, #tpu.memory_space<vmem>>, vector<32x32xbf16>
    tpu.vector_store %arg10[%c0_2, %c352], %2 {strides = array<i32>} : memref<32x384xbf16, #tpu.memory_space<vmem>>, vector<32x32xbf16>,
    %cst_3 = arith.constant 1.59438772E-4 : f32
    %c0_i32 = arith.constant 0 : i32
    %4 = arith.index_cast %c0_i32 : i32 to index
    %c0_4 = arith.constant 0 : index
    %c0_5 = arith.constant 0 : index
    %5 = vector.load %arg1[%4, %c0_4, %c0_5] : memref<1x32x288xbf16, #tpu.memory_space<vmem>>, vector<1x32x288xbf16>
    %6 = vector.shape_cast %5 : vector<1x32x288xbf16> to vector<32x288xbf16>
    %cst_6 = arith.constant 0.000000e+00 : f32
    %7 = vector.broadcast %cst_6 : f32 to vector<32x224xf32>
    %c0_7 = arith.constant 0 : index
    %c0_8 = arith.constant 0 : index
    %c0_9 = arith.constant 0 : index
    %8 = vector.load %arg2[%c0_7, %c0_8, %c0_9] : memref<9x32x32xbf16, #tpu.memory_space<vmem>>, vector<1x32x32xbf16>
    %9 = vector.shape_cast %8 : vector<1x32x32xbf16> to vector<32x32xbf16>
    %10 = vector.extract_strided_slice %6 {offsets = [0, 0], sizes = [32, 224], strides = [1, 1]} : vector<32x288xbf16> to vector<32x224xbf16>
    %cst_10 = arith.constant dense<0.000000e+00> : vector<32x224xf32>
    %11 = tpu.matmul %9, %10, %cst_10 {dimension_numbers = #tpu.dot_dimension_numbers<[1], [0], [0], [1], [0, 0, 1, 1], [], []>} : vector<32x32xbf16>, vector<32x224xbf16>, vector<32x224xf32> -> vector<32x224xf32>
    %12 = arith.addf %7, %11 : vector<32x224xf32>
    %c1 = arith.constant 1 : index
    %c0_11 = arith.constant 0 : index
    %c0_12 = arith.constant 0 : index
    %13 = vector.load %arg2[%c1, %c0_11, %c0_12] : memref<9x32x32xbf16, #tpu.memory_space<vmem>>, vector<1x32x32xbf16>
    %14 = vector.shape_cast %13 : vector<1x32x32xbf16> to vector<32x32xbf16>
    %15 = vector.extract_strided_slice %6 {offsets = [0, 1], sizes = [32, 224], strides = [1, 1]} : vector<32x288xbf16> to vector<32x224xbf16>
    %cst_13 = arith.constant dense<0.000000e+00> : vector<32x224xf32>
    %16 = tpu.matmul %14, %15, %cst_13 {dimension_numbers = #tpu.dot_dimension_numbers<[1], [0], [0], [1], [0, 0, 1, 1], [], []>} : vector<32x32xbf16>, vector<32x224xbf16>, vector<32x224xf32> -> vector<32x224xf32>
    %17 = arith.addf %12, %16 : vector<32x224xf32>
    %c2 = arith.constant 2 : index
    %c0_14 = arith.constant 0 : index
    %c0_15 = arith.constant 0 : index
    %18 = vector.load %arg2[%c2, %c0_14, %c0_15] : memref<9x32x32xbf16, #tpu.memory_space<vmem>>, vector<1x32x32xbf16>
    %19 = vector.shape_cast %18 : vector<1x32x32xbf16> to vector<32x32xbf16>
    %20 = vector.extract_strided_slice %6 {offsets = [0, 2], sizes = [32, 224], strides = [1, 1]} : vector<32x288xbf16> to vector<32x224xbf16>
    %cst_16 = arith.constant dense<0.000000e+00> : vector<32x224xf32>
    %21 = tpu.matmul %19, %20, %cst_16 {dimension_numbers = #tpu.dot_dimension_numbers<[1], [0], [0], [1], [0, 0, 1, 1], [], []>} : vector<32x32xbf16>, vector<32x224xbf16>, vector<32x224xf32> -> vector<32x224xf32>
    %22 = arith.addf %17, %21 : vector<32x224xf32>
    %c3 = arith.constant 3 : index
    %c0_17 = arith.constant 0 : index
    %c0_18 = arith.constant 0 : index
    %23 = vector.load %arg2[%c3, %c0_17, %c0_18] : memref<9x32x32xbf16, #tpu.memory_space<vmem>>, vector<1x32x32xbf16>
    %24 = vector.shape_cast %23 : vector<1x32x32xbf16> to vector<32x32xbf16>
    %25 = vector.extract_strided_slice %6 {offsets = [0, 16], sizes = [32, 224], strides = [1, 1]} : vector<32x288xbf16> to vector<32x224xbf16>
    %cst_19 = arith.constant dense<0.000000e+00> : vector<32x224xf32>
    %26 = tpu.matmul %24, %25, %cst_19 {dimension_numbers = #tpu.dot_dimension_numbers<[1], [0], [0], [1], [0, 0, 1, 1], [], []>} : vector<32x32xbf16>, vector<32x224xbf16>, vector<32x224xf32> -> vector<32x224xf32>
    %27 = arith.addf %22, %26 : vector<32x224xf32>
    %c4 = arith.constant 4 : index
    %c0_20 = arith.constant 0 : index
    %c0_21 = arith.constant 0 : index
    %28 = vector.load %arg2[%c4, %c0_20, %c0_21] : memref<9x32x32xbf16, #tpu.memory_space<vmem>>, vector<1x32x32xbf16>
    %29 = vector.shape_cast %28 : vector<1x32x32xbf16> to vector<32x32xbf16>
    %30 = vector.extract_strided_slice %6 {offsets = [0, 17], sizes = [32, 224], strides = [1, 1]} : vector<32x288xbf16> to vector<32x224xbf16>
    %cst_22 = arith.constant dense<0.000000e+00> : vector<32x224xf32>
    %31 = tpu.matmul %29, %30, %cst_22 {dimension_numbers = #tpu.dot_dimension_numbers<[1], [0], [0], [1], [0, 0, 1, 1], [], []>} : vector<32x32xbf16>, vector<32x224xbf16>, vector<32x224xf32> -> vector<32x224xf32>
    %32 = arith.addf %27, %31 : vector<32x224xf32>
    %c5 = arith.constant 5 : index
    %c0_23 = arith.constant 0 : index
    %c0_24 = arith.constant 0 : index
    %33 = vector.load %arg2[%c5, %c0_23, %c0_24] : memref<9x32x32xbf16, #tpu.memory_space<vmem>>, vector<1x32x32xbf16>
    %34 = vector.shape_cast %33 : vector<1x32x32xbf16> to vector<32x32xbf16>
    %35 = vector.extract_strided_slice %6 {offsets = [0, 18], sizes = [32, 224], strides = [1, 1]} : vector<32x288xbf16> to vector<32x224xbf16>
    %cst_25 = arith.constant dense<0.000000e+00> : vector<32x224xf32>
    %36 = tpu.matmul %34, %35, %cst_25 {dimension_numbers = #tpu.dot_dimension_numbers<[1], [0], [0], [1], [0, 0, 1, 1], [], []>} : vector<32x32xbf16>, vector<32x224xbf16>, vector<32x224xf32> -> vector<32x224xf32>
    %37 = arith.addf %32, %36 : vector<32x224xf32>
    %c6 = arith.constant 6 : index
    %c0_26 = arith.constant 0 : index
    %c0_27 = arith.constant 0 : index
    %38 = vector.load %arg2[%c6, %c0_26, %c0_27] : memref<9x32x32xbf16, #tpu.memory_space<vmem>>, vector<1x32x32xbf16>
    %39 = vector.shape_cast %38 : vector<1x32x32xbf16> to vector<32x32xbf16>
    %40 = vector.extract_strided_slice %6 {offsets = [0, 32], sizes = [32, 224], strides = [1, 1]} : vector<32x288xbf16> to vector<32x224xbf16>
    %cst_28 = arith.constant dense<0.000000e+00> : vector<32x224xf32>
    %41 = tpu.matmul %39, %40, %cst_28 {dimension_numbers = #tpu.dot_dimension_numbers<[1], [0], [0], [1], [0, 0, 1, 1], [], []>} : vector<32x32xbf16>, vector<32x224xbf16>, vector<32x224xf32> -> vector<32x224xf32>
    %42 = arith.addf %37, %41 : vector<32x224xf32>
    %c7 = arith.constant 7 : index
    %c0_29 = arith.constant 0 : index
    %c0_30 = arith.constant 0 : index
    %43 = vector.load %arg2[%c7, %c0_29, %c0_30] : memref<9x32x32xbf16, #tpu.memory_space<vmem>>, vector<1x32x32xbf16>
    %44 = vector.shape_cast %43 : vector<1x32x32xbf16> to vector<32x32xbf16>
    %45 = vector.extract_strided_slice %6 {offsets = [0, 33], sizes = [32, 224], strides = [1, 1]} : vector<32x288xbf16> to vector<32x224xbf16>
    %cst_31 = arith.constant dense<0.000000e+00> : vector<32x224xf32>
    %46 = tpu.matmul %44, %45, %cst_31 {dimension_numbers = #tpu.dot_dimension_numbers<[1], [0], [0], [1], [0, 0, 1, 1], [], []>} : vector<32x32xbf16>, vector<32x224xbf16>, vector<32x224xf32> -> vector<32x224xf32>
    %47 = arith.addf %42, %46 : vector<32x224xf32>
    %c8 = arith.constant 8 : index
    %c0_32 = arith.constant 0 : index
    %c0_33 = arith.constant 0 : index
    %48 = vector.load %arg2[%c8, %c0_32, %c0_33] : memref<9x32x32xbf16, #tpu.memory_space<vmem>>, vector<1x32x32xbf16>
    %49 = vector.shape_cast %48 : vector<1x32x32xbf16> to vector<32x32xbf16>
    %50 = vector.extract_strided_slice %6 {offsets = [0, 34], sizes = [32, 224], strides = [1, 1]} : vector<32x288xbf16> to vector<32x224xbf16>
    %cst_34 = arith.constant dense<0.000000e+00> : vector<32x224xf32>
    %51 = tpu.matmul %49, %50, %cst_34 {dimension_numbers = #tpu.dot_dimension_numbers<[1], [0], [0], [1], [0, 0, 1, 1], [], []>} : vector<32x32xbf16>, vector<32x224xbf16>, vector<32x224xf32> -> vector<32x224xf32>
    %52 = arith.addf %47, %51 : vector<32x224xf32>
    %c0_35 = arith.constant 0 : index
    %c0_36 = arith.constant 0 : index
    %53 = vector.load %arg3[%c0_35, %c0_36] : memref<32x1xf32, #tpu.memory_space<vmem>>, vector<32x1xf32>
    %54 = vector.broadcast %53 : vector<32x1xf32> to vector<32x224xf32>
    %55 = arith.addf %52, %54 : vector<32x224xf32>
    %c0_37 = arith.constant 0 : index
    %c0_38 = arith.constant 0 : index
    %56 = vector.load %arg8[%c0_37, %c0_38] : memref<1x224xf32, #tpu.memory_space<vmem>>, vector<1x224xf32>
    %57 = vector.broadcast %56 : vector<1x224xf32> to vector<32x224xf32>
    %58 = arith.mulf %55, %57 : vector<32x224xf32>
    %59 = vector.shape_cast %58 : vector<32x224xf32> to vector<1x32x224xf32>
    %cst_39 = arith.constant dense<0.000000e+00> : vector<1xf32>
    %60 = vector.multi_reduction <add>, %59, %cst_39 [1, 2] : vector<1x32x224xf32> to vector<1xf32>
    %61 = vector.shape_cast %60 : vector<1xf32> to vector<1x1x1xf32>
    %62 = vector.extract %61[0, 0, 0] : f32 from vector<1x1x1xf32>
    %63 = vector.broadcast %62 : f32 to vector<1x1xf32>
    %64 = arith.mulf %58, %55 : vector<32x224xf32>
    %65 = vector.shape_cast %64 : vector<32x224xf32> to vector<1x32x224xf32>
    %cst_40 = arith.constant dense<0.000000e+00> : vector<1xf32>
    %66 = vector.multi_reduction <add>, %65, %cst_40 [1, 2] : vector<1x32x224xf32> to vector<1xf32>
    %67 = vector.shape_cast %66 : vector<1xf32> to vector<1x1x1xf32>
    %68 = vector.extract %67[0, 0, 0] : f32 from vector<1x1x1xf32>
    %69 = vector.broadcast %68 : f32 to vector<1x1xf32>
    %70 = vector.broadcast %cst_3 : f32 to vector<1x1xf32>
    %71 = arith.mulf %63, %70 : vector<1x1xf32>
    %72 = vector.broadcast %cst_3 : f32 to vector<1x1xf32>
    %73 = arith.mulf %69, %72 : vector<1x1xf32>
    %74 = arith.mulf %71, %71 : vector<1x1xf32>
    %75 = arith.subf %73, %74 : vector<1x1xf32>
    %76 = vector.broadcast %71 : vector<1x1xf32> to vector<32x224xf32>
    %77 = arith.subf %55, %76 : vector<32x224xf32>
    %cst_41 = arith.constant 9.99999974E-6 : f32
    %78 = vector.broadcast %cst_41 : f32 to vector<1x1xf32>
    %79 = arith.addf %75, %78 : vector<1x1xf32>
    %80 = math.rsqrt %79 : vector<1x1xf32>
    %81 = vector.broadcast %80 : vector<1x1xf32> to vector<32x224xf32>
    %82 = arith.mulf %77, %81 : vector<32x224xf32>
    %c0_42 = arith.constant 0 : index
    %c0_43 = arith.constant 0 : index
    %83 = vector.load %arg4[%c0_42, %c0_43] : memref<32x224xf32, #tpu.memory_space<vmem>>, vector<32x224xf32>
    %84 = arith.mulf %82, %83 : vector<32x224xf32>
    %c0_44 = arith.constant 0 : index
    %c0_45 = arith.constant 0 : index
    %85 = vector.load %arg5[%c0_44, %c0_45] : memref<32x224xf32, #tpu.memory_space<vmem>>, vector<32x224xf32>
    %86 = arith.addf %84, %85 : vector<32x224xf32>
    %cst_46 = arith.constant 0.000000e+00 : f32
    %87 = vector.broadcast %cst_46 : f32 to vector<32x224xf32>
    %88 = arith.maximumf %86, %87 : vector<32x224xf32>
    %89 = vector.broadcast %56 : vector<1x224xf32> to vector<32x224xf32>
    %90 = arith.mulf %88, %89 : vector<32x224xf32>
    %91 = arith.truncf %90 : vector<32x224xf32> to vector<32x224xbf16>
    %c0_47 = arith.constant 0 : index
    %c128 = arith.constant 128 : index
    %92 = vector.load %arg10[%c0_47, %c128] : memref<32x384xbf16, #tpu.memory_space<vmem>>, vector<32x224xbf16>
    tpu.vector_store %arg10[%c0_47, %c128], %91 {strides = array<i32>} : memref<32x384xbf16, #tpu.memory_space<vmem>>, vector<32x224xbf16>,
    %c0_48 = arith.constant 0 : index
    %c0_49 = arith.constant 0 : index
    %93 = vector.load %arg10[%c0_48, %c0_49] : memref<32x384xbf16, #tpu.memory_space<vmem>>, vector<32x384xbf16>
    %cst_50 = arith.constant 0.000000e+00 : f32
    %94 = vector.broadcast %cst_50 : f32 to vector<8x224xf32>
    %c0_51 = arith.constant 0 : index
    %c0_52 = arith.constant 0 : index
    %c0_53 = arith.constant 0 : index
    %95 = vector.load %arg6[%c0_51, %c0_52, %c0_53] : memref<9x8x32xbf16, #tpu.memory_space<vmem>>, vector<1x8x32xbf16>
    %96 = vector.shape_cast %95 : vector<1x8x32xbf16> to vector<8x32xbf16>
    %97 = vector.extract_strided_slice %93 {offsets = [0, 111], sizes = [32, 224], strides = [1, 1]} : vector<32x384xbf16> to vector<32x224xbf16>
    %cst_54 = arith.constant dense<0.000000e+00> : vector<8x224xf32>
    %98 = tpu.matmul %96, %97, %cst_54 {dimension_numbers = #tpu.dot_dimension_numbers<[1], [0], [0], [1], [0, 0, 1, 1], [], []>} : vector<8x32xbf16>, vector<32x224xbf16>, vector<8x224xf32> -> vector<8x224xf32>
    %99 = arith.addf %94, %98 : vector<8x224xf32>
    %c1_55 = arith.constant 1 : index
    %c0_56 = arith.constant 0 : index
    %c0_57 = arith.constant 0 : index
    %100 = vector.load %arg6[%c1_55, %c0_56, %c0_57] : memref<9x8x32xbf16, #tpu.memory_space<vmem>>, vector<1x8x32xbf16>
    %101 = vector.shape_cast %100 : vector<1x8x32xbf16> to vector<8x32xbf16>
    %102 = vector.extract_strided_slice %93 {offsets = [0, 112], sizes = [32, 224], strides = [1, 1]} : vector<32x384xbf16> to vector<32x224xbf16>
    %cst_58 = arith.constant dense<0.000000e+00> : vector<8x224xf32>
    %103 = tpu.matmul %101, %102, %cst_58 {dimension_numbers = #tpu.dot_dimension_numbers<[1], [0], [0], [1], [0, 0, 1, 1], [], []>} : vector<8x32xbf16>, vector<32x224xbf16>, vector<8x224xf32> -> vector<8x224xf32>
    %104 = arith.addf %99, %103 : vector<8x224xf32>
    %c2_59 = arith.constant 2 : index
    %c0_60 = arith.constant 0 : index
    %c0_61 = arith.constant 0 : index
    %105 = vector.load %arg6[%c2_59, %c0_60, %c0_61] : memref<9x8x32xbf16, #tpu.memory_space<vmem>>, vector<1x8x32xbf16>
    %106 = vector.shape_cast %105 : vector<1x8x32xbf16> to vector<8x32xbf16>
    %107 = vector.extract_strided_slice %93 {offsets = [0, 113], sizes = [32, 224], strides = [1, 1]} : vector<32x384xbf16> to vector<32x224xbf16>
    %cst_62 = arith.constant dense<0.000000e+00> : vector<8x224xf32>
    %108 = tpu.matmul %106, %107, %cst_62 {dimension_numbers = #tpu.dot_dimension_numbers<[1], [0], [0], [1], [0, 0, 1, 1], [], []>} : vector<8x32xbf16>, vector<32x224xbf16>, vector<8x224xf32> -> vector<8x224xf32>
    %109 = arith.addf %104, %108 : vector<8x224xf32>
    %c3_63 = arith.constant 3 : index
    %c0_64 = arith.constant 0 : index
    %c0_65 = arith.constant 0 : index
    %110 = vector.load %arg6[%c3_63, %c0_64, %c0_65] : memref<9x8x32xbf16, #tpu.memory_space<vmem>>, vector<1x8x32xbf16>
    %111 = vector.shape_cast %110 : vector<1x8x32xbf16> to vector<8x32xbf16>
    %112 = vector.extract_strided_slice %93 {offsets = [0, 127], sizes = [32, 224], strides = [1, 1]} : vector<32x384xbf16> to vector<32x224xbf16>
    %cst_66 = arith.constant dense<0.000000e+00> : vector<8x224xf32>
    %113 = tpu.matmul %111, %112, %cst_66 {dimension_numbers = #tpu.dot_dimension_numbers<[1], [0], [0], [1], [0, 0, 1, 1], [], []>} : vector<8x32xbf16>, vector<32x224xbf16>, vector<8x224xf32> -> vector<8x224xf32>
    %114 = arith.addf %109, %113 : vector<8x224xf32>
    %c4_67 = arith.constant 4 : index
    %c0_68 = arith.constant 0 : index
    %c0_69 = arith.constant 0 : index
    %115 = vector.load %arg6[%c4_67, %c0_68, %c0_69] : memref<9x8x32xbf16, #tpu.memory_space<vmem>>, vector<1x8x32xbf16>
    %116 = vector.shape_cast %115 : vector<1x8x32xbf16> to vector<8x32xbf16>
    %117 = vector.extract_strided_slice %93 {offsets = [0, 128], sizes = [32, 224], strides = [1, 1]} : vector<32x384xbf16> to vector<32x224xbf16>
    %cst_70 = arith.constant dense<0.000000e+00> : vector<8x224xf32>
    %118 = tpu.matmul %116, %117, %cst_70 {dimension_numbers = #tpu.dot_dimension_numbers<[1], [0], [0], [1], [0, 0, 1, 1], [], []>} : vector<8x32xbf16>, vector<32x224xbf16>, vector<8x224xf32> -> vector<8x224xf32>
    %119 = arith.addf %114, %118 : vector<8x224xf32>
    %c5_71 = arith.constant 5 : index
    %c0_72 = arith.constant 0 : index
    %c0_73 = arith.constant 0 : index
    %120 = vector.load %arg6[%c5_71, %c0_72, %c0_73] : memref<9x8x32xbf16, #tpu.memory_space<vmem>>, vector<1x8x32xbf16>
    %121 = vector.shape_cast %120 : vector<1x8x32xbf16> to vector<8x32xbf16>
    %122 = vector.extract_strided_slice %93 {offsets = [0, 129], sizes = [32, 224], strides = [1, 1]} : vector<32x384xbf16> to vector<32x224xbf16>
    %cst_74 = arith.constant dense<0.000000e+00> : vector<8x224xf32>
    %123 = tpu.matmul %121, %122, %cst_74 {dimension_numbers = #tpu.dot_dimension_numbers<[1], [0], [0], [1], [0, 0, 1, 1], [], []>} : vector<8x32xbf16>, vector<32x224xbf16>, vector<8x224xf32> -> vector<8x224xf32>
    %124 = arith.addf %119, %123 : vector<8x224xf32>
    %c6_75 = arith.constant 6 : index
    %c0_76 = arith.constant 0 : index
    %c0_77 = arith.constant 0 : index
    %125 = vector.load %arg6[%c6_75, %c0_76, %c0_77] : memref<9x8x32xbf16, #tpu.memory_space<vmem>>, vector<1x8x32xbf16>
    %126 = vector.shape_cast %125 : vector<1x8x32xbf16> to vector<8x32xbf16>
    %127 = vector.extract_strided_slice %93 {offsets = [0, 143], sizes = [32, 224], strides = [1, 1]} : vector<32x384xbf16> to vector<32x224xbf16>
    %cst_78 = arith.constant dense<0.000000e+00> : vector<8x224xf32>
    %128 = tpu.matmul %126, %127, %cst_78 {dimension_numbers = #tpu.dot_dimension_numbers<[1], [0], [0], [1], [0, 0, 1, 1], [], []>} : vector<8x32xbf16>, vector<32x224xbf16>, vector<8x224xf32> -> vector<8x224xf32>
    %129 = arith.addf %124, %128 : vector<8x224xf32>
    %c7_79 = arith.constant 7 : index
    %c0_80 = arith.constant 0 : index
    %c0_81 = arith.constant 0 : index
    %130 = vector.load %arg6[%c7_79, %c0_80, %c0_81] : memref<9x8x32xbf16, #tpu.memory_space<vmem>>, vector<1x8x32xbf16>
    %131 = vector.shape_cast %130 : vector<1x8x32xbf16> to vector<8x32xbf16>
    %132 = vector.extract_strided_slice %93 {offsets = [0, 144], sizes = [32, 224], strides = [1, 1]} : vector<32x384xbf16> to vector<32x224xbf16>
    %cst_82 = arith.constant dense<0.000000e+00> : vector<8x224xf32>
    %133 = tpu.matmul %131, %132, %cst_82 {dimension_numbers = #tpu.dot_dimension_numbers<[1], [0], [0], [1], [0, 0, 1, 1], [], []>} : vector<8x32xbf16>, vector<32x224xbf16>, vector<8x224xf32> -> vector<8x224xf32>
    %134 = arith.addf %129, %133 : vector<8x224xf32>
    %c8_83 = arith.constant 8 : index
    %c0_84 = arith.constant 0 : index
    %c0_85 = arith.constant 0 : index
    %135 = vector.load %arg6[%c8_83, %c0_84, %c0_85] : memref<9x8x32xbf16, #tpu.memory_space<vmem>>, vector<1x8x32xbf16>
    %136 = vector.shape_cast %135 : vector<1x8x32xbf16> to vector<8x32xbf16>
    %137 = vector.extract_strided_slice %93 {offsets = [0, 145], sizes = [32, 224], strides = [1, 1]} : vector<32x384xbf16> to vector<32x224xbf16>
    %cst_86 = arith.constant dense<0.000000e+00> : vector<8x224xf32>
    %138 = tpu.matmul %136, %137, %cst_86 {dimension_numbers = #tpu.dot_dimension_numbers<[1], [0], [0], [1], [0, 0, 1, 1], [], []>} : vector<8x32xbf16>, vector<32x224xbf16>, vector<8x224xf32> -> vector<8x224xf32>
    %139 = arith.addf %134, %138 : vector<8x224xf32>
    %c0_87 = arith.constant 0 : index
    %c0_88 = arith.constant 0 : index
    %140 = vector.load %arg7[%c0_87, %c0_88] : memref<8x1xf32, #tpu.memory_space<vmem>>, vector<8x1xf32>
    %141 = vector.broadcast %140 : vector<8x1xf32> to vector<8x224xf32>
    %142 = arith.addf %139, %141 : vector<8x224xf32>
    %cst_89 = arith.constant dense<0xFF800000> : vector<224xf32>
    %143 = vector.multi_reduction <maximumf>, %142, %cst_89 [0] : vector<8x224xf32> to vector<224xf32>
    %144 = vector.shape_cast %143 : vector<224xf32> to vector<1x224xf32>
    %145 = vector.broadcast %144 : vector<1x224xf32> to vector<8x224xf32>
    %146 = arith.subf %142, %145 : vector<8x224xf32>
    %147 = math.exp %146 : vector<8x224xf32>
    %cst_90 = arith.constant dense<0.000000e+00> : vector<224xf32>
    %148 = vector.multi_reduction <add>, %147, %cst_90 [0] : vector<8x224xf32> to vector<224xf32>
    %149 = vector.shape_cast %148 : vector<224xf32> to vector<1x224xf32>
    %150 = vector.broadcast %149 : vector<1x224xf32> to vector<8x224xf32>
    %151 = arith.divf %147, %150 : vector<8x224xf32>
    %152 = arith.index_cast %c0_i32 : i32 to index
    %c0_91 = arith.constant 0 : index
    %c0_92 = arith.constant 0 : index
    %153 = vector.load %arg9[%152, %c0_91, %c0_92] : memref<1x8x224xf32, #tpu.memory_space<vmem>>, vector<1x8x224xf32>
    %154 = vector.shape_cast %153 : vector<1x8x224xf32> to vector<8x224xf32>
    %155 = vector.shape_cast %151 : vector<8x224xf32> to vector<1x8x224xf32>
    tpu.vector_store %arg9[%152, %c0_91, %c0_92], %155 {strides = array<i32>} : memref<1x8x224xf32, #tpu.memory_space<vmem>>, vector<1x8x224xf32>,
    %c1_i32 = arith.constant 1 : i32
    return
  }
  func.func @transform_0(%arg0: i32) -> (i32, i32, i32) {
    %c0_i32 = arith.constant 0 : i32
    %c0_i32_0 = arith.constant 0 : i32
    %c0_i32_1 = arith.constant 0 : i32
    return %arg0, %c0_i32, %c0_i32_0 : i32, i32, i32
  }
  func.func @transform_1(%arg0: i32) -> (i32, i32, i32) {
    %c0_i32 = arith.constant 0 : i32
    %c0_i32_0 = arith.constant 0 : i32
    %c0_i32_1 = arith.constant 0 : i32
    %c0_i32_2 = arith.constant 0 : i32
    return %c0_i32, %c0_i32_0, %c0_i32_1 : i32, i32, i32
  }
  func.func @transform_2(%arg0: i32) -> (i32, i32) {
    %c0_i32 = arith.constant 0 : i32
    %c0_i32_0 = arith.constant 0 : i32
    %c0_i32_1 = arith.constant 0 : i32
    return %c0_i32, %c0_i32_0 : i32, i32
  }
  func.func @transform_3(%arg0: i32) -> (i32, i32) {
    %c0_i32 = arith.constant 0 : i32
    %c0_i32_0 = arith.constant 0 : i32
    %c0_i32_1 = arith.constant 0 : i32
    return %c0_i32, %c0_i32_0 : i32, i32
  }
  func.func @transform_4(%arg0: i32) -> (i32, i32) {
    %c0_i32 = arith.constant 0 : i32
    %c0_i32_0 = arith.constant 0 : i32
    %c0_i32_1 = arith.constant 0 : i32
    return %c0_i32, %c0_i32_0 : i32, i32
  }
  func.func @transform_5(%arg0: i32) -> (i32, i32, i32) {
    %c0_i32 = arith.constant 0 : i32
    %c0_i32_0 = arith.constant 0 : i32
    %c0_i32_1 = arith.constant 0 : i32
    %c0_i32_2 = arith.constant 0 : i32
    return %c0_i32, %c0_i32_0, %c0_i32_1 : i32, i32, i32
  }
  func.func @transform_6(%arg0: i32) -> (i32, i32) {
    %c0_i32 = arith.constant 0 : i32
    %c0_i32_0 = arith.constant 0 : i32
    %c0_i32_1 = arith.constant 0 : i32
    return %c0_i32, %c0_i32_0 : i32, i32
  }
  func.func @transform_7(%arg0: i32) -> (i32, i32) {
    %c0_i32 = arith.constant 0 : i32
    %c0_i32_0 = arith.constant 0 : i32
    %c0_i32_1 = arith.constant 0 : i32
    return %c0_i32, %c0_i32_0 : i32, i32
  }
  func.func @transform_8(%arg0: i32) -> (i32, i32, i32) {
    %c0_i32 = arith.constant 0 : i32
    %c0_i32_0 = arith.constant 0 : i32
    %c0_i32_1 = arith.constant 0 : i32
    return %arg0, %c0_i32, %c0_i32_0 : i32, i32, i32
  }
}

</mosaic_0001>

<llo_original>
// kernel: single_adversery_forward.1
$region0: #{single_adversery_forward.1}
  #allocation0 [shape = 'u32[]', space=smem, size = 0x4, offset = 0x4, fixed_abs, tag = 'smem constant byte address 0x4 - core index']
  #allocation1 [shape = 'u32[144,128]{1,0:T(1,128)}', space=vmem, size = 0x12000, scoped, tag = 'internal scratch']
  #allocation2 [shape = 'bf16[32,384]{1,0:T(8,128)(2,1)}', space=vmem, size = 0x6000, scoped, tag = 'scratch operand']
  %s0 = inlined_call_operand.vmem [shape: bf16[2,32,288], index: 0, kind: input, shape index: {}]
  %s1 = inlined_call_operand.vmem [shape: bf16[9,32,32], index: 1, kind: input, shape index: {}]
  %s2 = inlined_call_operand.vmem [shape: f32[32,1], index: 2, kind: input, shape index: {}]
  %s3 = inlined_call_operand.vmem [shape: f32[32,224], index: 3, kind: input, shape index: {}]
  %s4 = inlined_call_operand.vmem [shape: f32[32,224], index: 4, kind: input, shape index: {}]
  %s5 = inlined_call_operand.vmem [shape: bf16[9,8,32], index: 5, kind: input, shape index: {}]
  %s6 = inlined_call_operand.vmem [shape: f32[8,1], index: 6, kind: input, shape index: {}]
  %s7 = inlined_call_operand.vmem [shape: f32[1,224], index: 7, kind: input, shape index: {}]
  %s8 = inlined_call_operand.vmem [shape: f32[2,8,224], index: 8, kind: output, shape index: {}]
  %s9 = sld [smem:[#allocation0]]
  $region65: #{single_adversery_forward.1} parent=0
    _
  %s11 = ssub.s32 1, %s9
  %s12 = scalar_select 0, %s11, %s9
  loop: start=0, step=1, limit=4
  $region2: #{single_adversery_forward.1} parent=0 // loop_pre_header
    _
  $region3: #{single_adversery_forward.1} parent=0 // loop_header
    %s14 = sphi 0, %s18
    %p15 = scmp.ge.s32.totalorder %s14, 4
    %s24 = sphi 0, %s26
    %s27 = sphi 0, %s24
    %s28 = sphi 0, %s27
    %s44 = sphi 0, %s28
    %s48 = sphi 0, %s48
    %s50 = sphi 0, %s48
    %s51 = sphi 0, %s50
    %s65 = sphi 0, %s51
    %s69 = sphi 0, %s69
    %s71 = sphi 0, %s69
    %s72 = sphi 0, %s71
    %s86 = sphi 0, %s72
    %s90 = sphi 0, %s90
    %s92 = sphi 0, %s90
    %s93 = sphi 0, %s92
    %s107 = sphi 0, %s93
    %s111 = sphi 0, %s111
    %s113 = sphi 0, %s111
    %s114 = sphi 0, %s113
    %s128 = sphi 0, %s114
    %s132 = sphi 0, %s132
    %s134 = sphi 0, %s132
    %s135 = sphi 0, %s134
    %s149 = sphi 0, %s135
    %s153 = sphi 0, %s153
    %s155 = sphi 0, %s153
    %s156 = sphi 0, %s155
    %s170 = sphi 0, %s156
    %s174 = sphi 0, %s174
    %s176 = sphi 0, %s174
    %s177 = sphi 0, %s176
    %s191 = sphi 0, %s177
    %s197 = sphi 0, %s199
    %s200 = sphi 0, %s197
    %s201 = sphi 0, %s200
    %s217 = sphi 0, %s201
  $region4: #{single_adversery_forward.1} parent=0 // loop_header_branch
    %17 = sbr.rel (%p15) target = $region8
  $region5: #{single_adversery_forward.1} parent=0 // loop_body
    %s19 = ssub.s32 %s14, 1
    %s20 = ssub.s32 %s14, 2
    %s21 = sadd.s32 %s14, 1
    %s22 = ssub.s32 %s14, %s21
    %p23 = scmp.eq.s32.totalorder %s22, 0
    %s25 = sadd.s32 %s24, 1
    %s26 = scalar_select %p23, %s24, %s25
    %p29 = pneg %p23
    %p30 = scmp.eq.s32.totalorder %s14, 1
    %p31 = por %p29, %p30
    %p32 = scmp.ne.s32.totalorder %s24, %s27
    %p33 = scmp.eq.s32.totalorder %s14, 0
    %p34 = por %p32, %p33
    %p35 = scmp.ne.s32.totalorder %s24, %s27
    %p36 = scmp.eq.s32.totalorder %s19, 1
    %p37 = por %p35, %p36
    %p38 = scmp.ne.s32.totalorder %s27, %s28
    %p39 = scmp.eq.s32.totalorder %s19, 0
    %p40 = por %p38, %p39
    %p41 = scmp.ne.s32.totalorder %s27, %s28
    %p42 = scmp.eq.s32.totalorder %s20, 1
    %p43 = por %p41, %p42
    %p45 = scmp.ne.s32.totalorder %s28, %s44
    %p46 = scmp.eq.s32.totalorder %s20, 0
    %p47 = por %p45, %p46
    %s49 = sadd.s32 %s48, 1
    %p52 = scmp.eq.s32.totalorder %s14, 1
    %p53 = scmp.ne.s32.totalorder %s48, %s50
    %p54 = scmp.eq.s32.totalorder %s14, 0
    %p55 = por %p53, %p54
    %p56 = scmp.ne.s32.totalorder %s48, %s50
    %p57 = scmp.eq.s32.totalorder %s19, 1
    %p58 = por %p56, %p57
    %p59 = scmp.ne.s32.totalorder %s50, %s51
    %p60 = scmp.eq.s32.totalorder %s19, 0
    %p61 = por %p59, %p60
    %p62 = scmp.ne.s32.totalorder %s50, %s51
    %p63 = scmp.eq.s32.totalorder %s20, 1
    %p64 = por %p62, %p63
    %p66 = scmp.ne.s32.totalorder %s51, %s65
    %p67 = scmp.eq.s32.totalorder %s20, 0
    %p68 = por %p66, %p67
    %s70 = sadd.s32 %s69, 1
    %p73 = scmp.eq.s32.totalorder %s14, 1
    %p74 = scmp.ne.s32.totalorder %s69, %s71
    %p75 = scmp.eq.s32.totalorder %s14, 0
    %p76 = por %p74, %p75
    %p77 = scmp.ne.s32.totalorder %s69, %s71
    %p78 = scmp.eq.s32.totalorder %s19, 1
    %p79 = por %p77, %p78
    %p80 = scmp.ne.s32.totalorder %s71, %s72
    %p81 = scmp.eq.s32.totalorder %s19, 0
    %p82 = por %p80, %p81
    %p83 = scmp.ne.s32.totalorder %s71, %s72
    %p84 = scmp.eq.s32.totalorder %s20, 1
    %p85 = por %p83, %p84
    %p87 = scmp.ne.s32.totalorder %s72, %s86
    %p88 = scmp.eq.s32.totalorder %s20, 0
    %p89 = por %p87, %p88
    %s91 = sadd.s32 %s90, 1
    %p94 = scmp.eq.s32.totalorder %s14, 1
    %p95 = scmp.ne.s32.totalorder %s90, %s92
    %p96 = scmp.eq.s32.totalorder %s14, 0
    %p97 = por %p95, %p96
    %p98 = scmp.ne.s32.totalorder %s90, %s92
    %p99 = scmp.eq.s32.totalorder %s19, 1
    %p100 = por %p98, %p99
    %p101 = scmp.ne.s32.totalorder %s92, %s93
    %p102 = scmp.eq.s32.totalorder %s19, 0
    %p103 = por %p101, %p102
    %p104 = scmp.ne.s32.totalorder %s92, %s93
    %p105 = scmp.eq.s32.totalorder %s20, 1
    %p106 = por %p104, %p105
    %p108 = scmp.ne.s32.totalorder %s93, %s107
    %p109 = scmp.eq.s32.totalorder %s20, 0
    %p110 = por %p108, %p109
    %s112 = sadd.s32 %s111, 1
    %p115 = scmp.eq.s32.totalorder %s14, 1
    %p116 = scmp.ne.s32.totalorder %s111, %s113
    %p117 = scmp.eq.s32.totalorder %s14, 0
    %p118 = por %p116, %p117
    %p119 = scmp.ne.s32.totalorder %s111, %s113
    %p120 = scmp.eq.s32.totalorder %s19, 1
    %p121 = por %p119, %p120
    %p122 = scmp.ne.s32.totalorder %s113, %s114
    %p123 = scmp.eq.s32.totalorder %s19, 0
    %p124 = por %p122, %p123
    %p125 = scmp.ne.s32.totalorder %s113, %s114
    %p126 = scmp.eq.s32.totalorder %s20, 1
    %p127 = por %p125, %p126
    %p129 = scmp.ne.s32.totalorder %s114, %s128
    %p130 = scmp.eq.s32.totalorder %s20, 0
    %p131 = por %p129, %p130
    %s133 = sadd.s32 %s132, 1
    %p136 = scmp.eq.s32.totalorder %s14, 1
    %p137 = scmp.ne.s32.totalorder %s132, %s134
    %p138 = scmp.eq.s32.totalorder %s14, 0
    %p139 = por %p137, %p138
    %p140 = scmp.ne.s32.totalorder %s132, %s134
    %p141 = scmp.eq.s32.totalorder %s19, 1
    %p142 = por %p140, %p141
    %p143 = scmp.ne.s32.totalorder %s134, %s135
    %p144 = scmp.eq.s32.totalorder %s19, 0
    %p145 = por %p143, %p144
    %p146 = scmp.ne.s32.totalorder %s134, %s135
    %p147 = scmp.eq.s32.totalorder %s20, 1
    %p148 = por %p146, %p147
    %p150 = scmp.ne.s32.totalorder %s135, %s149
    %p151 = scmp.eq.s32.totalorder %s20, 0
    %p152 = por %p150, %p151
    %s154 = sadd.s32 %s153, 1
    %p157 = scmp.eq.s32.totalorder %s14, 1
    %p158 = scmp.ne.s32.totalorder %s153, %s155
    %p159 = scmp.eq.s32.totalorder %s14, 0
    %p160 = por %p158, %p159
    %p161 = scmp.ne.s32.totalorder %s153, %s155
    %p162 = scmp.eq.s32.totalorder %s19, 1
    %p163 = por %p161, %p162
    %p164 = scmp.ne.s32.totalorder %s155, %s156
    %p165 = scmp.eq.s32.totalorder %s19, 0
    %p166 = por %p164, %p165
    %p167 = scmp.ne.s32.totalorder %s155, %s156
    %p168 = scmp.eq.s32.totalorder %s20, 1
    %p169 = por %p167, %p168
    %p171 = scmp.ne.s32.totalorder %s156, %s170
    %p172 = scmp.eq.s32.totalorder %s20, 0
    %p173 = por %p171, %p172
    %s175 = sadd.s32 %s174, 1
    %p178 = scmp.eq.s32.totalorder %s14, 1
    %p179 = scmp.ne.s32.totalorder %s174, %s176
    %p180 = scmp.eq.s32.totalorder %s14, 0
    %p181 = por %p179, %p180
    %p182 = scmp.ne.s32.totalorder %s174, %s176
    %p183 = scmp.eq.s32.totalorder %s19, 1
    %p184 = por %p182, %p183
    %p185 = scmp.ne.s32.totalorder %s176, %s177
    %p186 = scmp.eq.s32.totalorder %s19, 0
    %p187 = por %p185, %p186
    %p188 = scmp.ne.s32.totalorder %s176, %s177
    %p189 = scmp.eq.s32.totalorder %s20, 1
    %p190 = por %p188, %p189
    %p192 = scmp.ne.s32.totalorder %s177, %s191
    %p193 = scmp.eq.s32.totalorder %s20, 0
    %p194 = por %p192, %p193
    %s195 = ssub.s32 %s14, %s21
    %p196 = scmp.eq.s32.totalorder %s195, 0
    %s198 = sadd.s32 %s197, 1
    %s199 = scalar_select %p196, %s197, %s198
    %p202 = pneg %p196
    %p203 = scmp.eq.s32.totalorder %s14, 1
    %p204 = por %p202, %p203
    %p205 = scmp.ne.s32.totalorder %s197, %s200
    %p206 = scmp.eq.s32.totalorder %s14, 0
    %p207 = por %p205, %p206
    %p208 = scmp.ne.s32.totalorder %s197, %s200
    %p209 = scmp.eq.s32.totalorder %s19, 1
    %p210 = por %p208, %p209
    %p211 = scmp.ne.s32.totalorder %s200, %s201
    %p212 = scmp.eq.s32.totalorder %s19, 0
    %p213 = por %p211, %p212
    %p214 = scmp.ne.s32.totalorder %s200, %s201
    %p215 = scmp.eq.s32.totalorder %s20, 1
    %p216 = por %p214, %p215
    %p218 = scmp.ne.s32.totalorder %s201, %s217
    %p219 = scmp.eq.s32.totalorder %s20, 0
    %p220 = por %p218, %p219
    %p221 = scmp.le.s32.totalorder 1, %s14
    %p222 = scmp.lt.s32.totalorder %s14, 3
    %p223 = pnand %p221, %p222
    %p224 = pneg %p223
    // Predicated region
    $region9: #{single_adversery_forward.1} parent=5 // pred_check
      _
    $region10: #{single_adversery_forward.1} parent=5 // pred_check_branch
      %226 = sbr.rel (%p223) target = $region12
    $region11: #{single_adversery_forward.1} parent=5 // pred_region
      %s227 = ssub.s32 %s14, 1
      // Predicated region
      $region13: #{single_adversery_forward.1} parent=11 // pred_check
        %p228 = pneg %p61
      $region14: #{single_adversery_forward.1} parent=11 // pred_check_branch
        %230 = sbr.rel (%p228) target = $region16
      $region15: #{single_adversery_forward.1} parent=11 // pred_region
        _
      $region16: #{single_adversery_forward.1} parent=11 // pred_fallthru
        _
      // Predicated region
      $region17: #{single_adversery_forward.1} parent=11 // pred_check
        %p231 = pneg %p82
      $region18: #{single_adversery_forward.1} parent=11 // pred_check_branch
        %233 = sbr.rel (%p231) target = $region20
      $region19: #{single_adversery_forward.1} parent=11 // pred_region
        _
      $region20: #{single_adversery_forward.1} parent=11 // pred_fallthru
        _
      // Predicated region
      $region21: #{single_adversery_forward.1} parent=11 // pred_check
        %p234 = pneg %p103
      $region22: #{single_adversery_forward.1} parent=11 // pred_check_branch
        %236 = sbr.rel (%p234) target = $region24
      $region23: #{single_adversery_forward.1} parent=11 // pred_region
        _
      $region24: #{single_adversery_forward.1} parent=11 // pred_fallthru
        _
      // Predicated region
      $region25: #{single_adversery_forward.1} parent=11 // pred_check
        %p237 = pneg %p124
      $region26: #{single_adversery_forward.1} parent=11 // pred_check_branch
        %239 = sbr.rel (%p237) target = $region28
      $region27: #{single_adversery_forward.1} parent=11 // pred_region
        _
      $region28: #{single_adversery_forward.1} parent=11 // pred_fallthru
        _
      // Predicated region
      $region29: #{single_adversery_forward.1} parent=11 // pred_check
        %p240 = pneg %p145
      $region30: #{single_adversery_forward.1} parent=11 // pred_check_branch
        %242 = sbr.rel (%p240) target = $region32
      $region31: #{single_adversery_forward.1} parent=11 // pred_region
        _
      $region32: #{single_adversery_forward.1} parent=11 // pred_fallthru
        _
      // Predicated region
      $region33: #{single_adversery_forward.1} parent=11 // pred_check
        %p243 = pneg %p166
      $region34: #{single_adversery_forward.1} parent=11 // pred_check_branch
        %245 = sbr.rel (%p243) target = $region36
      $region35: #{single_adversery_forward.1} parent=11 // pred_region
        _
      $region36: #{single_adversery_forward.1} parent=11 // pred_fallthru
        _
      // Predicated region
      $region37: #{single_adversery_forward.1} parent=11 // pred_check
        %p246 = pneg %p187
      $region38: #{single_adversery_forward.1} parent=11 // pred_check_branch
        %248 = sbr.rel (%p246) target = $region40
      $region39: #{single_adversery_forward.1} parent=11 // pred_region
        _
      $region40: #{single_adversery_forward.1} parent=11 // pred_fallthru
        _
    $region12: #{single_adversery_forward.1} parent=5 // pred_fallthru
      _
    %p249 = scmp.lt.s32.totalorder %s14, 2
    // Predicated region
    $region41: #{single_adversery_forward.1} parent=5 // pred_check
      %p250 = pneg %p249
    $region42: #{single_adversery_forward.1} parent=5 // pred_check_branch
      %252 = sbr.rel (%p250) target = $region44
    $region43: #{single_adversery_forward.1} parent=5 // pred_region
      // Predicated region
      $region45: #{single_adversery_forward.1} parent=43 // pred_check
        %p253 = pneg %p34
      $region46: #{single_adversery_forward.1} parent=43 // pred_check_branch
        %255 = sbr.rel (%p253) target = $region48
      $region47: #{single_adversery_forward.1} parent=43 // pred_region
        %p256 = scmp.lt.s32.totalorder %s14, 1
        %s257 = scalar_select %p256, %s14, 1
        %s258 = smul.addr %s257, 12
        %s259 = smul.addr %s258, 4
        %s260 = scalar_lea.vmem %s0, %s259
      $region48: #{single_adversery_forward.1} parent=43 // pred_fallthru
        _
    $region44: #{single_adversery_forward.1} parent=5 // pred_fallthru
      _
    %p261 = scmp.le.s32.totalorder 1, %s14
    %p262 = scmp.lt.s32.totalorder %s14, 3
    %p263 = pnand %p261, %p262
    %p264 = pneg %p263
    // Predicated region
    $region49: #{single_adversery_forward.1} parent=5 // pred_check
      _
    $region50: #{single_adversery_forward.1} parent=5 // pred_check_branch
      %266 = sbr.rel (%p263) target = $region52
    $region51: #{single_adversery_forward.1} parent=5 // pred_region
      %s267 = ssub.s32 %s14, 1
      %p268 = scmp.lt.s32.totalorder %s19, 1
      %s269 = scalar_select %p268, %s19, 1
      %s270 = smul.addr %s269, 12
      %s271 = smul.addr %s270, 4
      %s272 = scalar_lea.vmem %s0, %s271
      %p273 = pneg %p40
      %p274 = pneg %p37
      %p275 = pneg %p61
      %p276 = pneg %p58
      %p277 = pneg %p82
      %p278 = pneg %p79
      %p279 = pneg %p103
      %p280 = pneg %p100
      %p281 = pneg %p124
      %p282 = pneg %p121
      %p283 = pneg %p145
      %p284 = pneg %p142
      %p285 = pneg %p166
      %p286 = pneg %p163
      %p287 = pneg %p187
      %p288 = pneg %p184
      %p289 = pneg %p213
      %p290 = pneg %p210
      %p291 = scmp.lt.s32.totalorder %s19, 1
      %s292 = scalar_select %p291, %s19, 1
      %s293 = smul.addr %s292, 2
      %s294 = smul.addr %s293, 8
      %s295 = scalar_lea.vmem %s8, %s294
      %p296 = scmp.lt.s32.totalorder %s19, 1
      %s297 = scalar_select %p296, %s19, 1
      %s298 = smul.addr %s297, 12
      %s299 = smul.addr %s298, 4
      %s300 = scalar_lea.vmem %s0, %s299
      %p301 = scmp.lt.s32.totalorder %s19, 1
      %s302 = scalar_select %p301, %s19, 1
      %s303 = smul.addr %s302, 2
      %s304 = smul.addr %s303, 8
      %s305 = scalar_lea.vmem %s8, %s304
      %307 = vst [vmem:[#allocation2] sm:$0xf] 0
      %308 = vst [vmem:[#allocation2 + $0xc] sm:$0xf] 0
      %309 = vst [vmem:[#allocation2 + $0x18] sm:$0xf] 0
      %310 = vst [vmem:[#allocation2 + $0x24] sm:$0xf] 0
      %vm311 = vcmask 1044224
      %312 = vst.msk [vmem:[#allocation2 + $0x8] sm:$0xf] %vm311, 0
      %313 = vst.msk [vmem:[#allocation2 + $0x14] sm:$0xf] %vm311, 0
      %314 = vst.msk [vmem:[#allocation2 + $0x20] sm:$0xf] %vm311, 0
      %315 = vst.msk [vmem:[#allocation2 + $0x2c] sm:$0xf] %vm311, 0
      %v316 = vld [vmem:[%s300] sm:$0xff]
      %v317 = vld [vmem:[%s300 + $0x8] sm:$0xf]
      %v318 = vld [vmem:[%s300 + $0xc] sm:$0xff]
      %v319 = vld [vmem:[%s300 + $0x14] sm:$0xf]
      %v320 = vld [vmem:[%s300 + $0x18] sm:$0xff]
      %v321 = vld [vmem:[%s300 + $0x20] sm:$0xf]
      %v322 = vld [vmem:[%s300 + $0x24] sm:$0xff]
      %v323 = vld [vmem:[%s300 + $0x2c] sm:$0xf]
      %v324 = vld [vmem:[%s1] sm:$0xf]
      %v325 = vld [vmem:[%s1 + $0x4] sm:$0xf]
      %v326 = vld [vmem:[%s1 + $0x8] sm:$0xf]
      %v327 = vld [vmem:[%s1 + $0xc] sm:$0xf]
      %s328 = scalar_lea.vmem %s1, 16
      %v329 = vld [vmem:[%s328] sm:$0xf]
      %v330 = vld [vmem:[%s328 + $0x4] sm:$0xf]
      %v331 = vld [vmem:[%s328 + $0x8] sm:$0xf]
      %v332 = vld [vmem:[%s328 + $0xc] sm:$0xf]
      %v337 = vunpack.c.l.b16 %v329
      %v338 = vunpack.c.l.b16 %v330
      %v339 = vunpack.c.l.b16 %v331
      %v340 = vunpack.c.l.b16 %v332
      %v341 = vpack.c.b16 %v338, %v337
      %v342 = vpack.c.b16 %v340, %v339
      %v347 = vunpack.c.l.b16 %v316
      %v348 = vunpack.c.h.b16 %v316
      %v349 = vunpack.c.l.b16 %v318
      %v350 = vunpack.c.h.b16 %v318
      %v351 = vunpack.c.l.b16 %v320
      %v352 = vunpack.c.h.b16 %v320
      %v353 = vunpack.c.l.b16 %v322
      %v354 = vunpack.c.h.b16 %v322
      %v355 = vpack.c.b16 %v349, %v347
      %v356 = vpack.c.b16 %v350, %v348
      %v357 = vpack.c.b16 %v353, %v351
      %v358 = vpack.c.b16 %v354, %v352
      %359 = vrot.lane.b32.xlu0 %v355, 127
      %v360 = vpop.permute.xlu0 %359
      %361 = vrot.lane.b32.xlu0 %v356, 127
      %v362 = vpop.permute.xlu0 %361
      %363 = vrot.lane.b32.xlu0 %v357, 127
      %v364 = vpop.permute.xlu0 %363
      %365 = vrot.lane.b32.xlu0 %v358, 127
      %v366 = vpop.permute.xlu0 %365
      %vm367 = vcmask 1039360
      %v368 = vsel %vm367, %v360, %v362
      %v369 = vsel %vm367, %v364, %v366
      %vm374 = vcmask 261120
      %v376 = vsel %vm374, %v341, 0
      %v379 = vsel %vm374, %v342, 0
      %381 = vmatprep.subr.bf16.mxu0 0
      %382 = vmatpush1.bf16.msra.mxu0 0
      %383 = vmatprep.subr.bf16.mxu0 0
      %384 = vmatpush1.bf16.msra.mxu0 0
      %385 = vmatprep.subr.bf16.mxu0 0
      %386 = vmatpush1.bf16.msra.mxu0 0
      %387 = vmatprep.subr.bf16.mxu0 0
      %388 = vmatpush1.bf16.msra.mxu0 0
      %389 = vmatprep.subr.bf16.mxu0 0
      %390 = vmatpush1.bf16.msra.mxu0 0
      %391 = vmatprep.subr.bf16.mxu0 0
      %392 = vmatpush1.bf16.msra.mxu0 0
      %393 = vmatprep.subr.bf16.mxu0 %v366
      %394 = vmatpush1.bf16.msra.mxu0 %v369
      %395 = vmatprep.subr.bf16.mxu0 %v362
      %396 = vmatpush1.bf16.msra.mxu0 %v368
      %397 = vmatprep.subr.bf16.mxu0 0
      %398 = vmatpush2.bf16.msra.mxu0 0
      %399 = vmatprep.subr.bf16.mxu0 0
      %400 = vmatpush2.bf16.msra.mxu0 0
      %401 = vmatprep.subr.bf16.mxu0 0
      %402 = vmatpush2.bf16.msra.mxu0 0
      %403 = vmatprep.subr.bf16.mxu0 0
      %404 = vmatpush2.bf16.msra.mxu0 0
      %405 = vmatprep.subr.bf16.mxu0 0
      %406 = vmatpush2.bf16.msra.mxu0 0
      %407 = vmatprep.subr.bf16.mxu0 0
      %408 = vmatpush2.bf16.msra.mxu0 0
      %409 = vmatprep.subr.bf16.mxu0 0
      %410 = vmatpush2.bf16.msra.mxu0 0
      %411 = vmatprep.subr.bf16.mxu0 0
      %412 = vmatpush2.bf16.msra.mxu0 0
      %413 = vmatprep.mubr.bf16.mxu0 0
      %414 = vmatmul.mubr.bf16.gmra.mxu0 %v376
      %v415 = vpop.f32.mrf.mxu0
      %v416 = vadd.f32 0.0, %v415
      %v417 = vpop.f32.mrf.mxu0
      %v418 = vadd.f32 0.0, %v417
      %v419 = vpop.f32.mrf.mxu0
      %v420 = vadd.f32 0.0, %v419
      %v421 = vpop.f32.mrf.mxu0
      %v422 = vadd.f32 0.0, %v421
      %423 = vmatprep.mubr.bf16.mxu0 0
      %424 = vmatmul.mubr.bf16.gmra.mxu0 %v379
      %v425 = vpop.f32.mrf.mxu0
      %v426 = vadd.f32 0.0, %v425
      %v427 = vpop.f32.mrf.mxu0
      %v428 = vadd.f32 0.0, %v427
      %v429 = vpop.f32.mrf.mxu0
      %v430 = vadd.f32 0.0, %v429
      %v431 = vpop.f32.mrf.mxu0
      %v432 = vadd.f32 0.0, %v431
      %433 = vdwg.mxu0
      %v438 = vunpack.c.l.b16 %v324
      %v439 = vunpack.c.l.b16 %v325
      %v440 = vunpack.c.l.b16 %v326
      %v441 = vunpack.c.l.b16 %v327
      %v442 = vpack.c.b16 %v439, %v438
      %v443 = vpack.c.b16 %v441, %v440
      %v449 = vsel %vm374, %v442, 0
      %v452 = vsel %vm374, %v443, 0
      %454 = vmatprep.subr.bf16.mxu0 0
      %455 = vmatpush1.bf16.msra.mxu0 0
      %456 = vmatprep.subr.bf16.mxu0 0
      %457 = vmatpush1.bf16.msra.mxu0 0
      %458 = vmatprep.subr.bf16.mxu0 0
      %459 = vmatpush1.bf16.msra.mxu0 0
      %460 = vmatprep.subr.bf16.mxu0 0
      %461 = vmatpush1.bf16.msra.mxu0 0
      %462 = vmatprep.subr.bf16.mxu0 0
      %463 = vmatpush1.bf16.msra.mxu0 0
      %464 = vmatprep.subr.bf16.mxu0 0
      %465 = vmatpush1.bf16.msra.mxu0 0
      %466 = vmatprep.subr.bf16.mxu0 %v358
      %467 = vmatpush1.bf16.msra.mxu0 %v357
      %468 = vmatprep.subr.bf16.mxu0 %v356
      %469 = vmatpush1.bf16.msra.mxu0 %v355
      %470 = vmatprep.subr.bf16.mxu0 0
      %471 = vmatpush2.bf16.msra.mxu0 0
      %472 = vmatprep.subr.bf16.mxu0 0
      %473 = vmatpush2.bf16.msra.mxu0 0
      %474 = vmatprep.subr.bf16.mxu0 0
      %475 = vmatpush2.bf16.msra.mxu0 0
      %476 = vmatprep.subr.bf16.mxu0 0
      %477 = vmatpush2.bf16.msra.mxu0 0
      %478 = vmatprep.subr.bf16.mxu0 0
      %479 = vmatpush2.bf16.msra.mxu0 0
      %480 = vmatprep.subr.bf16.mxu0 0
      %481 = vmatpush2.bf16.msra.mxu0 0
      %482 = vmatprep.subr.bf16.mxu0 0
      %483 = vmatpush2.bf16.msra.mxu0 0
      %484 = vmatprep.subr.bf16.mxu0 0
      %485 = vmatpush2.bf16.msra.mxu0 0
      %486 = vmatprep.mubr.bf16.mxu0 0
      %487 = vmatmul.mubr.bf16.gmra.mxu0 %v449
      %v488 = vpop.f32.mrf.mxu0
      %v489 = vadd.f32 %v416, %v488
      %v490 = vpop.f32.mrf.mxu0
      %v491 = vadd.f32 %v418, %v490
      %v492 = vpop.f32.mrf.mxu0
      %v493 = vadd.f32 %v420, %v492
      %v494 = vpop.f32.mrf.mxu0
      %v495 = vadd.f32 %v422, %v494
      %496 = vmatprep.mubr.bf16.mxu0 0
      %497 = vmatmul.mubr.bf16.gmra.mxu0 %v452
      %v498 = vpop.f32.mrf.mxu0
      %v499 = vadd.f32 %v426, %v498
      %v500 = vpop.f32.mrf.mxu0
      %v501 = vadd.f32 %v428, %v500
      %v502 = vpop.f32.mrf.mxu0
      %v503 = vadd.f32 %v430, %v502
      %v504 = vpop.f32.mrf.mxu0
      %v505 = vadd.f32 %v432, %v504
      %506 = vdwg.mxu0
      %s507 = scalar_lea.vmem %s1, 32
      %v508 = vld [vmem:[%s507] sm:$0xf]
      %v509 = vld [vmem:[%s507 + $0x4] sm:$0xf]
      %v510 = vld [vmem:[%s507 + $0x8] sm:$0xf]
      %v511 = vld [vmem:[%s507 + $0xc] sm:$0xf]
      %v516 = vunpack.c.l.b16 %v508
      %v517 = vunpack.c.l.b16 %v509
      %v518 = vunpack.c.l.b16 %v510
      %v519 = vunpack.c.l.b16 %v511
      %v520 = vpack.c.b16 %v517, %v516
      %v521 = vpack.c.b16 %v519, %v518
      %522 = vrot.lane.b32.xlu0 %v355, 126
      %v523 = vpop.permute.xlu0 %522
      %524 = vrot.lane.b32.xlu0 %v356, 126
      %v525 = vpop.permute.xlu0 %524
      %526 = vrot.lane.b32.xlu0 %v357, 126
      %v527 = vpop.permute.xlu0 %526
      %528 = vrot.lane.b32.xlu0 %v358, 126
      %v529 = vpop.permute.xlu0 %528
      %vm530 = vcmask 1031168
      %v531 = vsel %vm530, %v523, %v525
      %v532 = vsel %vm530, %v527, %v529
      %v538 = vsel %vm374, %v520, 0
      %v541 = vsel %vm374, %v521, 0
      %543 = vmatprep.subr.bf16.mxu0 0
      %544 = vmatpush1.bf16.msra.mxu0 0
      %545 = vmatprep.subr.bf16.mxu0 0
      %546 = vmatpush1.bf16.msra.mxu0 0
      %547 = vmatprep.subr.bf16.mxu0 0
      %548 = vmatpush1.bf16.msra.mxu0 0
      %549 = vmatprep.subr.bf16.mxu0 0
      %550 = vmatpush1.bf16.msra.mxu0 0
      %551 = vmatprep.subr.bf16.mxu0 0
      %552 = vmatpush1.bf16.msra.mxu0 0
      %553 = vmatprep.subr.bf16.mxu0 0
      %554 = vmatpush1.bf16.msra.mxu0 0
      %555 = vmatprep.subr.bf16.mxu0 %v529
      %556 = vmatpush1.bf16.msra.mxu0 %v532
      %557 = vmatprep.subr.bf16.mxu0 %v525
      %558 = vmatpush1.bf16.msra.mxu0 %v531
      %559 = vmatprep.subr.bf16.mxu0 0
      %560 = vmatpush2.bf16.msra.mxu0 0
      %561 = vmatprep.subr.bf16.mxu0 0
      %562 = vmatpush2.bf16.msra.mxu0 0
      %563 = vmatprep.subr.bf16.mxu0 0
      %564 = vmatpush2.bf16.msra.mxu0 0
      %565 = vmatprep.subr.bf16.mxu0 0
      %566 = vmatpush2.bf16.msra.mxu0 0
      %567 = vmatprep.subr.bf16.mxu0 0
      %568 = vmatpush2.bf16.msra.mxu0 0
      %569 = vmatprep.subr.bf16.mxu0 0
      %570 = vmatpush2.bf16.msra.mxu0 0
      %571 = vmatprep.subr.bf16.mxu0 0
      %572 = vmatpush2.bf16.msra.mxu0 0
      %573 = vmatprep.subr.bf16.mxu0 0
      %574 = vmatpush2.bf16.msra.mxu0 0
      %575 = vmatprep.mubr.bf16.mxu0 0
      %576 = vmatmul.mubr.bf16.gmra.mxu0 %v538
      %v577 = vpop.f32.mrf.mxu0
      %v578 = vadd.f32 0.0, %v577
      %v579 = vpop.f32.mrf.mxu0
      %v580 = vadd.f32 0.0, %v579
      %v581 = vpop.f32.mrf.mxu0
      %v582 = vadd.f32 0.0, %v581
      %v583 = vpop.f32.mrf.mxu0
      %v584 = vadd.f32 0.0, %v583
      %585 = vmatprep.mubr.bf16.mxu0 0
      %586 = vmatmul.mubr.bf16.gmra.mxu0 %v541
      %v587 = vpop.f32.mrf.mxu0
      %v588 = vadd.f32 0.0, %v587
      %v589 = vpop.f32.mrf.mxu0
      %v590 = vadd.f32 0.0, %v589
      %v591 = vpop.f32.mrf.mxu0
      %v592 = vadd.f32 0.0, %v591
      %v593 = vpop.f32.mrf.mxu0
      %v594 = vadd.f32 0.0, %v593
      %595 = vdwg.mxu0
      %v596 = vadd.f32 %v489, %v578
      %v597 = vadd.f32 %v491, %v580
      %v598 = vadd.f32 %v493, %v582
      %v599 = vadd.f32 %v495, %v584
      %v600 = vadd.f32 %v499, %v588
      %v601 = vadd.f32 %v501, %v590
      %v602 = vadd.f32 %v503, %v592
      %v603 = vadd.f32 %v505, %v594
      %s604 = scalar_lea.vmem %s1, 48
      %v605 = vld [vmem:[%s604] sm:$0xf]
      %v606 = vld [vmem:[%s604 + $0x4] sm:$0xf]
      %v607 = vld [vmem:[%s604 + $0x8] sm:$0xf]
      %v608 = vld [vmem:[%s604 + $0xc] sm:$0xf]
      %v613 = vunpack.c.l.b16 %v605
      %v614 = vunpack.c.l.b16 %v606
      %v615 = vunpack.c.l.b16 %v607
      %v616 = vunpack.c.l.b16 %v608
      %v617 = vpack.c.b16 %v614, %v613
      %v618 = vpack.c.b16 %v616, %v615
      %619 = vrot.lane.b32.xlu0 %v355, 112
      %v620 = vpop.permute.xlu0 %619
      %621 = vrot.lane.b32.xlu0 %v356, 112
      %v622 = vpop.permute.xlu0 %621
      %623 = vrot.lane.b32.xlu0 %v357, 112
      %v624 = vpop.permute.xlu0 %623
      %625 = vrot.lane.b32.xlu0 %v358, 112
      %v626 = vpop.permute.xlu0 %625
      %vm627 = vcmask 916480
      %v628 = vsel %vm627, %v620, %v622
      %v629 = vsel %vm627, %v624, %v626
      %v635 = vsel %vm374, %v617, 0
      %v638 = vsel %vm374, %v618, 0
      %640 = vmatprep.subr.bf16.mxu0 0
      %641 = vmatpush1.bf16.msra.mxu0 0
      %642 = vmatprep.subr.bf16.mxu0 0
      %643 = vmatpush1.bf16.msra.mxu0 0
      %644 = vmatprep.subr.bf16.mxu0 0
      %645 = vmatpush1.bf16.msra.mxu0 0
      %646 = vmatprep.subr.bf16.mxu0 0
      %647 = vmatpush1.bf16.msra.mxu0 0
      %648 = vmatprep.subr.bf16.mxu0 0
      %649 = vmatpush1.bf16.msra.mxu0 0
      %650 = vmatprep.subr.bf16.mxu0 0
      %651 = vmatpush1.bf16.msra.mxu0 0
      %652 = vmatprep.subr.bf16.mxu0 %v626
      %653 = vmatpush1.bf16.msra.mxu0 %v629
      %654 = vmatprep.subr.bf16.mxu0 %v622
      %655 = vmatpush1.bf16.msra.mxu0 %v628
      %656 = vmatprep.subr.bf16.mxu0 0
      %657 = vmatpush2.bf16.msra.mxu0 0
      %658 = vmatprep.subr.bf16.mxu0 0
      %659 = vmatpush2.bf16.msra.mxu0 0
      %660 = vmatprep.subr.bf16.mxu0 0
      %661 = vmatpush2.bf16.msra.mxu0 0
      %662 = vmatprep.subr.bf16.mxu0 0
      %663 = vmatpush2.bf16.msra.mxu0 0
      %664 = vmatprep.subr.bf16.mxu0 0
      %665 = vmatpush2.bf16.msra.mxu0 0
      %666 = vmatprep.subr.bf16.mxu0 0
      %667 = vmatpush2.bf16.msra.mxu0 0
      %668 = vmatprep.subr.bf16.mxu0 0
      %669 = vmatpush2.bf16.msra.mxu0 0
      %670 = vmatprep.subr.bf16.mxu0 0
      %671 = vmatpush2.bf16.msra.mxu0 0
      %672 = vmatprep.mubr.bf16.mxu0 0
      %673 = vmatmul.mubr.bf16.gmra.mxu0 %v635
      %v674 = vpop.f32.mrf.mxu0
      %v675 = vadd.f32 0.0, %v674
      %v676 = vpop.f32.mrf.mxu0
      %v677 = vadd.f32 0.0, %v676
      %v678 = vpop.f32.mrf.mxu0
      %v679 = vadd.f32 0.0, %v678
      %v680 = vpop.f32.mrf.mxu0
      %v681 = vadd.f32 0.0, %v680
      %682 = vmatprep.mubr.bf16.mxu0 0
      %683 = vmatmul.mubr.bf16.gmra.mxu0 %v638
      %v684 = vpop.f32.mrf.mxu0
      %v685 = vadd.f32 0.0, %v684
      %v686 = vpop.f32.mrf.mxu0
      %v687 = vadd.f32 0.0, %v686
      %v688 = vpop.f32.mrf.mxu0
      %v689 = vadd.f32 0.0, %v688
      %v690 = vpop.f32.mrf.mxu0
      %v691 = vadd.f32 0.0, %v690
      %692 = vdwg.mxu0
      %v693 = vadd.f32 %v596, %v675
      %v694 = vadd.f32 %v597, %v677
      %v695 = vadd.f32 %v598, %v679
      %v696 = vadd.f32 %v599, %v681
      %v697 = vadd.f32 %v600, %v685
      %v698 = vadd.f32 %v601, %v687
      %v699 = vadd.f32 %v602, %v689
      %v700 = vadd.f32 %v603, %v691
      %s701 = scalar_lea.vmem %s1, 64
      %v702 = vld [vmem:[%s701] sm:$0xf]
      %v703 = vld [vmem:[%s701 + $0x4] sm:$0xf]
      %v704 = vld [vmem:[%s701 + $0x8] sm:$0xf]
      %v705 = vld [vmem:[%s701 + $0xc] sm:$0xf]
      %v710 = vunpack.c.l.b16 %v702
      %v711 = vunpack.c.l.b16 %v703
      %v712 = vunpack.c.l.b16 %v704
      %v713 = vunpack.c.l.b16 %v705
      %v714 = vpack.c.b16 %v711, %v710
      %v715 = vpack.c.b16 %v713, %v712
      %716 = vrot.lane.b32.xlu0 %v355, 111
      %v717 = vpop.permute.xlu0 %716
      %718 = vrot.lane.b32.xlu0 %v356, 111
      %v719 = vpop.permute.xlu0 %718
      %720 = vrot.lane.b32.xlu0 %v357, 111
      %v721 = vpop.permute.xlu0 %720
      %722 = vrot.lane.b32.xlu0 %v358, 111
      %v723 = vpop.permute.xlu0 %722
      %vm724 = vcmask 908288
      %v725 = vsel %vm724, %v717, %v719
      %v726 = vsel %vm724, %v721, %v723
      %v732 = vsel %vm374, %v714, 0
      %v735 = vsel %vm374, %v715, 0
      %737 = vmatprep.subr.bf16.mxu0 0
      %738 = vmatpush1.bf16.msra.mxu0 0
      %739 = vmatprep.subr.bf16.mxu0 0
      %740 = vmatpush1.bf16.msra.mxu0 0
      %741 = vmatprep.subr.bf16.mxu0 0
      %742 = vmatpush1.bf16.msra.mxu0 0
      %743 = vmatprep.subr.bf16.mxu0 0
      %744 = vmatpush1.bf16.msra.mxu0 0
      %745 = vmatprep.subr.bf16.mxu0 0
      %746 = vmatpush1.bf16.msra.mxu0 0
      %747 = vmatprep.subr.bf16.mxu0 0
      %748 = vmatpush1.bf16.msra.mxu0 0
      %749 = vmatprep.subr.bf16.mxu0 %v723
      %750 = vmatpush1.bf16.msra.mxu0 %v726
      %751 = vmatprep.subr.bf16.mxu0 %v719
      %752 = vmatpush1.bf16.msra.mxu0 %v725
      %753 = vmatprep.subr.bf16.mxu0 0
      %754 = vmatpush2.bf16.msra.mxu0 0
      %755 = vmatprep.subr.bf16.mxu0 0
      %756 = vmatpush2.bf16.msra.mxu0 0
      %757 = vmatprep.subr.bf16.mxu0 0
      %758 = vmatpush2.bf16.msra.mxu0 0
      %759 = vmatprep.subr.bf16.mxu0 0
      %760 = vmatpush2.bf16.msra.mxu0 0
      %761 = vmatprep.subr.bf16.mxu0 0
      %762 = vmatpush2.bf16.msra.mxu0 0
      %763 = vmatprep.subr.bf16.mxu0 0
      %764 = vmatpush2.bf16.msra.mxu0 0
      %765 = vmatprep.subr.bf16.mxu0 0
      %766 = vmatpush2.bf16.msra.mxu0 0
      %767 = vmatprep.subr.bf16.mxu0 0
      %768 = vmatpush2.bf16.msra.mxu0 0
      %769 = vmatprep.mubr.bf16.mxu0 0
      %770 = vmatmul.mubr.bf16.gmra.mxu0 %v732
      %v771 = vpop.f32.mrf.mxu0
      %v772 = vadd.f32 0.0, %v771
      %v773 = vpop.f32.mrf.mxu0
      %v774 = vadd.f32 0.0, %v773
      %v775 = vpop.f32.mrf.mxu0
      %v776 = vadd.f32 0.0, %v775
      %v777 = vpop.f32.mrf.mxu0
      %v778 = vadd.f32 0.0, %v777
      %779 = vmatprep.mubr.bf16.mxu0 0
      %780 = vmatmul.mubr.bf16.gmra.mxu0 %v735
      %v781 = vpop.f32.mrf.mxu0
      %v782 = vadd.f32 0.0, %v781
      %v783 = vpop.f32.mrf.mxu0
      %v784 = vadd.f32 0.0, %v783
      %v785 = vpop.f32.mrf.mxu0
      %v786 = vadd.f32 0.0, %v785
      %v787 = vpop.f32.mrf.mxu0
      %v788 = vadd.f32 0.0, %v787
      %789 = vdwg.mxu0
      %v790 = vadd.f32 %v693, %v772
      %v791 = vadd.f32 %v694, %v774
      %v792 = vadd.f32 %v695, %v776
      %v793 = vadd.f32 %v696, %v778
      %v794 = vadd.f32 %v697, %v782
      %v795 = vadd.f32 %v698, %v784
      %v796 = vadd.f32 %v699, %v786
      %v797 = vadd.f32 %v700, %v788
      %s798 = scalar_lea.vmem %s1, 80
      %v799 = vld [vmem:[%s798] sm:$0xf]
      %v800 = vld [vmem:[%s798 + $0x4] sm:$0xf]
      %v801 = vld [vmem:[%s798 + $0x8] sm:$0xf]
      %v802 = vld [vmem:[%s798 + $0xc] sm:$0xf]
      %v807 = vunpack.c.l.b16 %v799
      %v808 = vunpack.c.l.b16 %v800
      %v809 = vunpack.c.l.b16 %v801
      %v810 = vunpack.c.l.b16 %v802
      %v811 = vpack.c.b16 %v808, %v807
      %v812 = vpack.c.b16 %v810, %v809
      %813 = vrot.lane.b32.xlu0 %v355, 110
      %v814 = vpop.permute.xlu0 %813
      %815 = vrot.lane.b32.xlu0 %v356, 110
      %v816 = vpop.permute.xlu0 %815
      %817 = vrot.lane.b32.xlu0 %v357, 110
      %v818 = vpop.permute.xlu0 %817
      %819 = vrot.lane.b32.xlu0 %v358, 110
      %v820 = vpop.permute.xlu0 %819
      %vm821 = vcmask 900096
      %v822 = vsel %vm821, %v814, %v816
      %v823 = vsel %vm821, %v818, %v820
      %v829 = vsel %vm374, %v811, 0
      %v832 = vsel %vm374, %v812, 0
      %834 = vmatprep.subr.bf16.mxu0 0
      %835 = vmatpush1.bf16.msra.mxu0 0
      %836 = vmatprep.subr.bf16.mxu0 0
      %837 = vmatpush1.bf16.msra.mxu0 0
      %838 = vmatprep.subr.bf16.mxu0 0
      %839 = vmatpush1.bf16.msra.mxu0 0
      %840 = vmatprep.subr.bf16.mxu0 0
      %841 = vmatpush1.bf16.msra.mxu0 0
      %842 = vmatprep.subr.bf16.mxu0 0
      %843 = vmatpush1.bf16.msra.mxu0 0
      %844 = vmatprep.subr.bf16.mxu0 0
      %845 = vmatpush1.bf16.msra.mxu0 0
      %846 = vmatprep.subr.bf16.mxu0 %v820
      %847 = vmatpush1.bf16.msra.mxu0 %v823
      %848 = vmatprep.subr.bf16.mxu0 %v816
      %849 = vmatpush1.bf16.msra.mxu0 %v822
      %850 = vmatprep.subr.bf16.mxu0 0
      %851 = vmatpush2.bf16.msra.mxu0 0
      %852 = vmatprep.subr.bf16.mxu0 0
      %853 = vmatpush2.bf16.msra.mxu0 0
      %854 = vmatprep.subr.bf16.mxu0 0
      %855 = vmatpush2.bf16.msra.mxu0 0
      %856 = vmatprep.subr.bf16.mxu0 0
      %857 = vmatpush2.bf16.msra.mxu0 0
      %858 = vmatprep.subr.bf16.mxu0 0
      %859 = vmatpush2.bf16.msra.mxu0 0
      %860 = vmatprep.subr.bf16.mxu0 0
      %861 = vmatpush2.bf16.msra.mxu0 0
      %862 = vmatprep.subr.bf16.mxu0 0
      %863 = vmatpush2.bf16.msra.mxu0 0
      %864 = vmatprep.subr.bf16.mxu0 0
      %865 = vmatpush2.bf16.msra.mxu0 0
      %866 = vmatprep.mubr.bf16.mxu0 0
      %867 = vmatmul.mubr.bf16.gmra.mxu0 %v829
      %v868 = vpop.f32.mrf.mxu0
      %v869 = vadd.f32 0.0, %v868
      %v870 = vpop.f32.mrf.mxu0
      %v871 = vadd.f32 0.0, %v870
      %v872 = vpop.f32.mrf.mxu0
      %v873 = vadd.f32 0.0, %v872
      %v874 = vpop.f32.mrf.mxu0
      %v875 = vadd.f32 0.0, %v874
      %876 = vmatprep.mubr.bf16.mxu0 0
      %877 = vmatmul.mubr.bf16.gmra.mxu0 %v832
      %v878 = vpop.f32.mrf.mxu0
      %v879 = vadd.f32 0.0, %v878
      %v880 = vpop.f32.mrf.mxu0
      %v881 = vadd.f32 0.0, %v880
      %v882 = vpop.f32.mrf.mxu0
      %v883 = vadd.f32 0.0, %v882
      %v884 = vpop.f32.mrf.mxu0
      %v885 = vadd.f32 0.0, %v884
      %886 = vdwg.mxu0
      %v887 = vadd.f32 %v790, %v869
      %v888 = vadd.f32 %v791, %v871
      %v889 = vadd.f32 %v792, %v873
      %v890 = vadd.f32 %v793, %v875
      %v891 = vadd.f32 %v794, %v879
      %v892 = vadd.f32 %v795, %v881
      %v893 = vadd.f32 %v796, %v883
      %v894 = vadd.f32 %v797, %v885
      %s895 = scalar_lea.vmem %s1, 96
      %v896 = vld [vmem:[%s895] sm:$0xf]
      %v897 = vld [vmem:[%s895 + $0x4] sm:$0xf]
      %v898 = vld [vmem:[%s895 + $0x8] sm:$0xf]
      %v899 = vld [vmem:[%s895 + $0xc] sm:$0xf]
      %v904 = vunpack.c.l.b16 %v896
      %v905 = vunpack.c.l.b16 %v897
      %v906 = vunpack.c.l.b16 %v898
      %v907 = vunpack.c.l.b16 %v899
      %v908 = vpack.c.b16 %v905, %v904
      %v909 = vpack.c.b16 %v907, %v906
      %910 = vrot.lane.b32.xlu0 %v355, 96
      %v911 = vpop.permute.xlu0 %910
      %912 = vrot.lane.b32.xlu0 %v356, 96
      %v913 = vpop.permute.xlu0 %912
      %914 = vrot.lane.b32.xlu0 %v357, 96
      %v915 = vpop.permute.xlu0 %914
      %916 = vrot.lane.b32.xlu0 %v358, 96
      %v917 = vpop.permute.xlu0 %916
      %vm918 = vcmask 785408
      %v919 = vsel %vm918, %v911, %v913
      %v920 = vsel %vm918, %v915, %v917
      %v926 = vsel %vm374, %v908, 0
      %v929 = vsel %vm374, %v909, 0
      %931 = vmatprep.subr.bf16.mxu0 0
      %932 = vmatpush1.bf16.msra.mxu0 0
      %933 = vmatprep.subr.bf16.mxu0 0
      %934 = vmatpush1.bf16.msra.mxu0 0
      %935 = vmatprep.subr.bf16.mxu0 0
      %936 = vmatpush1.bf16.msra.mxu0 0
      %937 = vmatprep.subr.bf16.mxu0 0
      %938 = vmatpush1.bf16.msra.mxu0 0
      %939 = vmatprep.subr.bf16.mxu0 0
      %940 = vmatpush1.bf16.msra.mxu0 0
      %941 = vmatprep.subr.bf16.mxu0 0
      %942 = vmatpush1.bf16.msra.mxu0 0
      %943 = vmatprep.subr.bf16.mxu0 %v917
      %944 = vmatpush1.bf16.msra.mxu0 %v920
      %945 = vmatprep.subr.bf16.mxu0 %v913
      %946 = vmatpush1.bf16.msra.mxu0 %v919
      %947 = vmatprep.subr.bf16.mxu0 0
      %948 = vmatpush2.bf16.msra.mxu0 0
      %949 = vmatprep.subr.bf16.mxu0 0
      %950 = vmatpush2.bf16.msra.mxu0 0
      %951 = vmatprep.subr.bf16.mxu0 0
      %952 = vmatpush2.bf16.msra.mxu0 0
      %953 = vmatprep.subr.bf16.mxu0 0
      %954 = vmatpush2.bf16.msra.mxu0 0
      %955 = vmatprep.subr.bf16.mxu0 0
      %956 = vmatpush2.bf16.msra.mxu0 0
      %957 = vmatprep.subr.bf16.mxu0 0
      %958 = vmatpush2.bf16.msra.mxu0 0
      %959 = vmatprep.subr.bf16.mxu0 0
      %960 = vmatpush2.bf16.msra.mxu0 0
      %961 = vmatprep.subr.bf16.mxu0 0
      %962 = vmatpush2.bf16.msra.mxu0 0
      %963 = vmatprep.mubr.bf16.mxu0 0
      %964 = vmatmul.mubr.bf16.gmra.mxu0 %v926
      %v965 = vpop.f32.mrf.mxu0
      %v966 = vadd.f32 0.0, %v965
      %v967 = vpop.f32.mrf.mxu0
      %v968 = vadd.f32 0.0, %v967
      %v969 = vpop.f32.mrf.mxu0
      %v970 = vadd.f32 0.0, %v969
      %v971 = vpop.f32.mrf.mxu0
      %v972 = vadd.f32 0.0, %v971
      %973 = vmatprep.mubr.bf16.mxu0 0
      %974 = vmatmul.mubr.bf16.gmra.mxu0 %v929
      %v975 = vpop.f32.mrf.mxu0
      %v976 = vadd.f32 0.0, %v975
      %v977 = vpop.f32.mrf.mxu0
      %v978 = vadd.f32 0.0, %v977
      %v979 = vpop.f32.mrf.mxu0
      %v980 = vadd.f32 0.0, %v979
      %v981 = vpop.f32.mrf.mxu0
      %v982 = vadd.f32 0.0, %v981
      %983 = vdwg.mxu0
      %v984 = vadd.f32 %v887, %v966
      %v985 = vadd.f32 %v888, %v968
      %v986 = vadd.f32 %v889, %v970
      %v987 = vadd.f32 %v890, %v972
      %v988 = vadd.f32 %v891, %v976
      %v989 = vadd.f32 %v892, %v978
      %v990 = vadd.f32 %v893, %v980
      %v991 = vadd.f32 %v894, %v982
      %s992 = scalar_lea.vmem %s1, 112
      %v993 = vld [vmem:[%s992] sm:$0xf]
      %v994 = vld [vmem:[%s992 + $0x4] sm:$0xf]
      %v995 = vld [vmem:[%s992 + $0x8] sm:$0xf]
      %v996 = vld [vmem:[%s992 + $0xc] sm:$0xf]
      %v1001 = vunpack.c.l.b16 %v993
      %v1002 = vunpack.c.l.b16 %v994
      %v1003 = vunpack.c.l.b16 %v995
      %v1004 = vunpack.c.l.b16 %v996
      %v1005 = vpack.c.b16 %v1002, %v1001
      %v1006 = vpack.c.b16 %v1004, %v1003
      %v1011 = vunpack.c.l.b16 %v317
      %v1012 = vunpack.c.l.b16 %v319
      %v1013 = vunpack.c.l.b16 %v321
      %v1014 = vunpack.c.l.b16 %v323
      %v1015 = vpack.c.b16 %v1012, %v1011
      %v1016 = vpack.c.b16 %v1014, %v1013
      %1017 = vrot.lane.b32.xlu0 %v355, 95
      %v1018 = vpop.permute.xlu0 %1017
      %1019 = vrot.lane.b32.xlu0 %v356, 95
      %v1020 = vpop.permute.xlu0 %1019
      %1021 = vrot.lane.b32.xlu0 %v1015, 95
      %v1022 = vpop.permute.xlu0 %1021
      %1023 = vrot.lane.b32.xlu0 %v357, 95
      %v1024 = vpop.permute.xlu0 %1023
      %1025 = vrot.lane.b32.xlu0 %v358, 95
      %v1026 = vpop.permute.xlu0 %1025
      %1027 = vrot.lane.b32.xlu0 %v1016, 95
      %v1028 = vpop.permute.xlu0 %1027
      %vm1029 = vcmask 777216
      %v1030 = vsel %vm1029, %v1018, %v1020
      %v1031 = vsel %vm1029, %v1020, %v1022
      %v1032 = vsel %vm1029, %v1024, %v1026
      %v1033 = vsel %vm1029, %v1026, %v1028
      %v1039 = vsel %vm374, %v1005, 0
      %v1042 = vsel %vm374, %v1006, 0
      %1044 = vmatprep.subr.bf16.mxu0 0
      %1045 = vmatpush1.bf16.msra.mxu0 0
      %1046 = vmatprep.subr.bf16.mxu0 0
      %1047 = vmatpush1.bf16.msra.mxu0 0
      %1048 = vmatprep.subr.bf16.mxu0 0
      %1049 = vmatpush1.bf16.msra.mxu0 0
      %1050 = vmatprep.subr.bf16.mxu0 0
      %1051 = vmatpush1.bf16.msra.mxu0 0
      %1052 = vmatprep.subr.bf16.mxu0 0
      %1053 = vmatpush1.bf16.msra.mxu0 0
      %1054 = vmatprep.subr.bf16.mxu0 0
      %1055 = vmatpush1.bf16.msra.mxu0 0
      %1056 = vmatprep.subr.bf16.mxu0 %v1033
      %1057 = vmatpush1.bf16.msra.mxu0 %v1032
      %1058 = vmatprep.subr.bf16.mxu0 %v1031
      %1059 = vmatpush1.bf16.msra.mxu0 %v1030
      %1060 = vmatprep.subr.bf16.mxu0 0
      %1061 = vmatpush2.bf16.msra.mxu0 0
      %1062 = vmatprep.subr.bf16.mxu0 0
      %1063 = vmatpush2.bf16.msra.mxu0 0
      %1064 = vmatprep.subr.bf16.mxu0 0
      %1065 = vmatpush2.bf16.msra.mxu0 0
      %1066 = vmatprep.subr.bf16.mxu0 0
      %1067 = vmatpush2.bf16.msra.mxu0 0
      %1068 = vmatprep.subr.bf16.mxu0 0
      %1069 = vmatpush2.bf16.msra.mxu0 0
      %1070 = vmatprep.subr.bf16.mxu0 0
      %1071 = vmatpush2.bf16.msra.mxu0 0
      %1072 = vmatprep.subr.bf16.mxu0 0
      %1073 = vmatpush2.bf16.msra.mxu0 0
      %1074 = vmatprep.subr.bf16.mxu0 0
      %1075 = vmatpush2.bf16.msra.mxu0 0
      %1076 = vmatprep.mubr.bf16.mxu0 0
      %1077 = vmatmul.mubr.bf16.gmra.mxu0 %v1039
      %v1078 = vpop.f32.mrf.mxu0
      %v1079 = vadd.f32 0.0, %v1078
      %v1080 = vpop.f32.mrf.mxu0
      %v1081 = vadd.f32 0.0, %v1080
      %v1082 = vpop.f32.mrf.mxu0
      %v1083 = vadd.f32 0.0, %v1082
      %v1084 = vpop.f32.mrf.mxu0
      %v1085 = vadd.f32 0.0, %v1084
      %1086 = vmatprep.mubr.bf16.mxu0 0
      %1087 = vmatmul.mubr.bf16.gmra.mxu0 %v1042
      %v1088 = vpop.f32.mrf.mxu0
      %v1089 = vadd.f32 0.0, %v1088
      %v1090 = vpop.f32.mrf.mxu0
      %v1091 = vadd.f32 0.0, %v1090
      %v1092 = vpop.f32.mrf.mxu0
      %v1093 = vadd.f32 0.0, %v1092
      %v1094 = vpop.f32.mrf.mxu0
      %v1095 = vadd.f32 0.0, %v1094
      %1096 = vdwg.mxu0
      %v1097 = vadd.f32 %v984, %v1079
      %v1098 = vadd.f32 %v985, %v1081
      %v1099 = vadd.f32 %v986, %v1083
      %v1100 = vadd.f32 %v987, %v1085
      %v1101 = vadd.f32 %v988, %v1089
      %v1102 = vadd.f32 %v989, %v1091
      %v1103 = vadd.f32 %v990, %v1093
      %v1104 = vadd.f32 %v991, %v1095
      %s1105 = scalar_lea.vmem %s1, 128
      %v1106 = vld [vmem:[%s1105] sm:$0xf]
      %v1107 = vld [vmem:[%s1105 + $0x4] sm:$0xf]
      %v1108 = vld [vmem:[%s1105 + $0x8] sm:$0xf]
      %v1109 = vld [vmem:[%s1105 + $0xc] sm:$0xf]
      %v1114 = vunpack.c.l.b16 %v1106
      %v1115 = vunpack.c.l.b16 %v1107
      %v1116 = vunpack.c.l.b16 %v1108
      %v1117 = vunpack.c.l.b16 %v1109
      %v1118 = vpack.c.b16 %v1115, %v1114
      %v1119 = vpack.c.b16 %v1117, %v1116
      %1120 = vrot.lane.b32.xlu0 %v355, 94
      %v1121 = vpop.permute.xlu0 %1120
      %1122 = vrot.lane.b32.xlu0 %v356, 94
      %v1123 = vpop.permute.xlu0 %1122
      %1124 = vrot.lane.b32.xlu0 %v1015, 94
      %v1125 = vpop.permute.xlu0 %1124
      %1126 = vrot.lane.b32.xlu0 %v357, 94
      %v1127 = vpop.permute.xlu0 %1126
      %1128 = vrot.lane.b32.xlu0 %v358, 94
      %v1129 = vpop.permute.xlu0 %1128
      %1130 = vrot.lane.b32.xlu0 %v1016, 94
      %v1131 = vpop.permute.xlu0 %1130
      %vm1132 = vcmask 769024
      %v1133 = vsel %vm1132, %v1121, %v1123
      %v1134 = vsel %vm1132, %v1123, %v1125
      %v1135 = vsel %vm1132, %v1127, %v1129
      %v1136 = vsel %vm1132, %v1129, %v1131
      %v1142 = vsel %vm374, %v1118, 0
      %v1145 = vsel %vm374, %v1119, 0
      %1147 = vmatprep.subr.bf16.mxu0 0
      %1148 = vmatpush1.bf16.msra.mxu0 0
      %1149 = vmatprep.subr.bf16.mxu0 0
      %1150 = vmatpush1.bf16.msra.mxu0 0
      %1151 = vmatprep.subr.bf16.mxu0 0
      %1152 = vmatpush1.bf16.msra.mxu0 0
      %1153 = vmatprep.subr.bf16.mxu0 0
      %1154 = vmatpush1.bf16.msra.mxu0 0
      %1155 = vmatprep.subr.bf16.mxu0 0
      %1156 = vmatpush1.bf16.msra.mxu0 0
      %1157 = vmatprep.subr.bf16.mxu0 0
      %1158 = vmatpush1.bf16.msra.mxu0 0
      %1159 = vmatprep.subr.bf16.mxu0 %v1136
      %1160 = vmatpush1.bf16.msra.mxu0 %v1135
      %1161 = vmatprep.subr.bf16.mxu0 %v1134
      %1162 = vmatpush1.bf16.msra.mxu0 %v1133
      %1163 = vmatprep.subr.bf16.mxu0 0
      %1164 = vmatpush2.bf16.msra.mxu0 0
      %1165 = vmatprep.subr.bf16.mxu0 0
      %1166 = vmatpush2.bf16.msra.mxu0 0
      %1167 = vmatprep.subr.bf16.mxu0 0
      %1168 = vmatpush2.bf16.msra.mxu0 0
      %1169 = vmatprep.subr.bf16.mxu0 0
      %1170 = vmatpush2.bf16.msra.mxu0 0
      %1171 = vmatprep.subr.bf16.mxu0 0
      %1172 = vmatpush2.bf16.msra.mxu0 0
      %1173 = vmatprep.subr.bf16.mxu0 0
      %1174 = vmatpush2.bf16.msra.mxu0 0
      %1175 = vmatprep.subr.bf16.mxu0 0
      %1176 = vmatpush2.bf16.msra.mxu0 0
      %1177 = vmatprep.subr.bf16.mxu0 0
      %1178 = vmatpush2.bf16.msra.mxu0 0
      %1179 = vmatprep.mubr.bf16.mxu0 0
      %1180 = vmatmul.mubr.bf16.gmra.mxu0 %v1142
      %v1181 = vpop.f32.mrf.mxu0
      %v1182 = vadd.f32 0.0, %v1181
      %v1183 = vpop.f32.mrf.mxu0
      %v1184 = vadd.f32 0.0, %v1183
      %v1185 = vpop.f32.mrf.mxu0
      %v1186 = vadd.f32 0.0, %v1185
      %v1187 = vpop.f32.mrf.mxu0
      %v1188 = vadd.f32 0.0, %v1187
      %1189 = vmatprep.mubr.bf16.mxu0 0
      %1190 = vmatmul.mubr.bf16.gmra.mxu0 %v1145
      %v1191 = vpop.f32.mrf.mxu0
      %v1192 = vadd.f32 0.0, %v1191
      %v1193 = vpop.f32.mrf.mxu0
      %v1194 = vadd.f32 0.0, %v1193
      %v1195 = vpop.f32.mrf.mxu0
      %v1196 = vadd.f32 0.0, %v1195
      %v1197 = vpop.f32.mrf.mxu0
      %v1198 = vadd.f32 0.0, %v1197
      %1199 = vdwg.mxu0
      %v1200 = vadd.f32 %v1097, %v1182
      %v1201 = vadd.f32 %v1098, %v1184
      %v1202 = vadd.f32 %v1099, %v1186
      %v1203 = vadd.f32 %v1100, %v1188
      %v1204 = vadd.f32 %v1101, %v1192
      %v1205 = vadd.f32 %v1102, %v1194
      %v1206 = vadd.f32 %v1103, %v1196
      %v1207 = vadd.f32 %v1104, %v1198
      %v1208 = vld [vmem:[%s2] sm:$0xff]
      %v1209 = vld [vmem:[%s2 + $0x8] sm:$0xff]
      %v1210 = vld [vmem:[%s2 + $0x10] sm:$0xff]
      %v1211 = vld [vmem:[%s2 + $0x18] sm:$0xff]
      %1213 = vset.pattern.permute.xlu0 0
      %1214 = vperm.xlu0 %1213, %v1208
      %v1215 = vpop.permute.xlu0 %1214
      %1218 = vset.pattern.permute.xlu0 0
      %1219 = vperm.xlu0 %1218, %v1209
      %v1220 = vpop.permute.xlu0 %1219
      %1223 = vset.pattern.permute.xlu0 0
      %1224 = vperm.xlu0 %1223, %v1210
      %v1225 = vpop.permute.xlu0 %1224
      %1228 = vset.pattern.permute.xlu0 0
      %1229 = vperm.xlu0 %1228, %v1211
      %v1230 = vpop.permute.xlu0 %1229
      %v1232 = vadd.f32 %v1200, %v1215
      %v1233 = vadd.f32 %v1201, %v1215
      %v1234 = vadd.f32 %v1202, %v1220
      %v1235 = vadd.f32 %v1203, %v1220
      %v1236 = vadd.f32 %v1204, %v1225
      %v1237 = vadd.f32 %v1205, %v1225
      %v1238 = vadd.f32 %v1206, %v1230
      %v1239 = vadd.f32 %v1207, %v1230
      %v1240 = vld [vmem:[%s7] sm:$0x3]
      %v1242 = vlaneseq
      %v1243 = vshrl.u32 %v1242, 7
      %v1244 = vsub.s32 0, %v1243
      %v1245 = vrot.slane %v1240, %v1244
      %v1246 = vlaneseq
      %v1247 = vshrl.u32 %v1246, 7
      %v1248 = vsub.s32 1, %v1247
      %v1249 = vrot.slane %v1240, %v1248
      %v1252 = vmul.f32 %v1232, %v1245
      %v1253 = vmul.f32 %v1233, %v1249
      %v1254 = vmul.f32 %v1234, %v1245
      %v1255 = vmul.f32 %v1235, %v1249
      %v1256 = vmul.f32 %v1236, %v1245
      %v1257 = vmul.f32 %v1237, %v1249
      %v1258 = vmul.f32 %v1238, %v1245
      %v1259 = vmul.f32 %v1239, %v1249
      %vm1260 = vcmask 785408
      %v1261 = vsel %vm1260, %v1253, 0.0
      %v1262 = vadd.f32 %v1252, %v1261
      %v1263 = vadd.f32 %v1262, %v1254
      %v1264 = vsel %vm1260, %v1255, 0.0
      %v1265 = vadd.f32 %v1263, %v1264
      %v1266 = vadd.f32 %v1265, %v1256
      %v1267 = vsel %vm1260, %v1257, 0.0
      %v1268 = vadd.f32 %v1266, %v1267
      %v1269 = vadd.f32 %v1268, %v1258
      %v1270 = vsel %vm1260, %v1259, 0.0
      %v1271 = vadd.f32 %v1269, %v1270
      %1272 = vadd.xlane.f32.xlu0 %v1271
      %v1273 = vpop.xlane.xlu0 %1272
      %v1274 = vrot.slane %v1273, 4
      %v1275 = vadd.f32 %v1273, %v1274
      %v1276 = vrot.slane %v1275, 2
      %v1277 = vadd.f32 %v1275, %v1276
      %v1278 = vrot.slane %v1277, 1
      %v1279 = vadd.f32 %v1277, %v1278
      %s1280 = vtos %v1279
      %v1281 = vstv %s1280
      %v1282 = vmul.f32 %v1252, %v1232
      %v1283 = vmul.f32 %v1253, %v1233
      %v1284 = vmul.f32 %v1254, %v1234
      %v1285 = vmul.f32 %v1255, %v1235
      %v1286 = vmul.f32 %v1256, %v1236
      %v1287 = vmul.f32 %v1257, %v1237
      %v1288 = vmul.f32 %v1258, %v1238
      %v1289 = vmul.f32 %v1259, %v1239
      %v1290 = vsel %vm1260, %v1283, 0.0
      %v1291 = vadd.f32 %v1282, %v1290
      %v1292 = vadd.f32 %v1291, %v1284
      %v1293 = vsel %vm1260, %v1285, 0.0
      %v1294 = vadd.f32 %v1292, %v1293
      %v1295 = vadd.f32 %v1294, %v1286
      %v1296 = vsel %vm1260, %v1287, 0.0
      %v1297 = vadd.f32 %v1295, %v1296
      %v1298 = vadd.f32 %v1297, %v1288
      %v1299 = vsel %vm1260, %v1289, 0.0
      %v1300 = vadd.f32 %v1298, %v1299
      %1301 = vadd.xlane.f32.xlu0 %v1300
      %v1302 = vpop.xlane.xlu0 %1301
      %v1303 = vrot.slane %v1302, 4
      %v1304 = vadd.f32 %v1302, %v1303
      %v1305 = vrot.slane %v1304, 2
      %v1306 = vadd.f32 %v1304, %v1305
      %v1307 = vrot.slane %v1306, 1
      %v1308 = vadd.f32 %v1306, %v1307
      %s1309 = vtos %v1308
      %v1310 = vstv %s1309
      %v1311 = vmul.f32 %v1281, 0.00015943877
      %v1312 = vmul.f32 %v1310, 0.00015943877
      %v1313 = vmul.f32 %v1311, %v1311
      %v1314 = vsub.f32 %v1312, %v1313
      %v1315 = vsub.f32 %v1232, %v1311
      %v1316 = vsub.f32 %v1233, %v1311
      %v1317 = vsub.f32 %v1234, %v1311
      %v1318 = vsub.f32 %v1235, %v1311
      %v1319 = vsub.f32 %v1236, %v1311
      %v1320 = vsub.f32 %v1237, %v1311
      %v1321 = vsub.f32 %v1238, %v1311
      %v1322 = vsub.f32 %v1239, %v1311
      %v1323 = vadd.f32 %v1314, 1e-05
      %v1324 = vrsqrt.pop %v1323
      %v1325 = vmul.f32 %v1315, %v1324
      %v1326 = vmul.f32 %v1316, %v1324
      %v1327 = vmul.f32 %v1317, %v1324
      %v1328 = vmul.f32 %v1318, %v1324
      %v1329 = vmul.f32 %v1319, %v1324
      %v1330 = vmul.f32 %v1320, %v1324
      %v1331 = vmul.f32 %v1321, %v1324
      %v1332 = vmul.f32 %v1322, %v1324
      %v1333 = vld [vmem:[%s3] sm:$0xff]
      %v1334 = vld [vmem:[%s3 + $0x8] sm:$0xff]
      %v1335 = vld [vmem:[%s3 + $0x10] sm:$0xff]
      %v1336 = vld [vmem:[%s3 + $0x18] sm:$0xff]
      %v1337 = vld [vmem:[%s3 + $0x20] sm:$0xff]
      %v1338 = vld [vmem:[%s3 + $0x28] sm:$0xff]
      %v1339 = vld [vmem:[%s3 + $0x30] sm:$0xff]
      %v1340 = vld [vmem:[%s3 + $0x38] sm:$0xff]
      %v1341 = vmul.f32 %v1325, %v1333
      %v1342 = vmul.f32 %v1326, %v1334
      %v1343 = vmul.f32 %v1327, %v1335
      %v1344 = vmul.f32 %v1328, %v1336
      %v1345 = vmul.f32 %v1329, %v1337
      %v1346 = vmul.f32 %v1330, %v1338
      %v1347 = vmul.f32 %v1331, %v1339
      %v1348 = vmul.f32 %v1332, %v1340
      %v1349 = vld [vmem:[%s4] sm:$0xff]
      %v1350 = vld [vmem:[%s4 + $0x8] sm:$0xff]
      %v1351 = vld [vmem:[%s4 + $0x10] sm:$0xff]
      %v1352 = vld [vmem:[%s4 + $0x18] sm:$0xff]
      %v1353 = vld [vmem:[%s4 + $0x20] sm:$0xff]
      %v1354 = vld [vmem:[%s4 + $0x28] sm:$0xff]
      %v1355 = vld [vmem:[%s4 + $0x30] sm:$0xff]
      %v1356 = vld [vmem:[%s4 + $0x38] sm:$0xff]
      %v1357 = vadd.f32 %v1341, %v1349
      %v1358 = vadd.f32 %v1342, %v1350
      %v1359 = vadd.f32 %v1343, %v1351
      %v1360 = vadd.f32 %v1344, %v1352
      %v1361 = vadd.f32 %v1345, %v1353
      %v1362 = vadd.f32 %v1346, %v1354
      %v1363 = vadd.f32 %v1347, %v1355
      %v1364 = vadd.f32 %v1348, %v1356
      %v1365 = vmax.f32 %v1357, 0.0
      %v1366 = vmax.f32 %v1358, 0.0
      %v1367 = vmax.f32 %v1359, 0.0
      %v1368 = vmax.f32 %v1360, 0.0
      %v1369 = vmax.f32 %v1361, 0.0
      %v1370 = vmax.f32 %v1362, 0.0
      %v1371 = vmax.f32 %v1363, 0.0
      %v1372 = vmax.f32 %v1364, 0.0
      %v1373 = vmul.f32 %v1365, %v1245
      %v1374 = vmul.f32 %v1366, %v1249
      %v1375 = vmul.f32 %v1367, %v1245
      %v1376 = vmul.f32 %v1368, %v1249
      %v1377 = vmul.f32 %v1369, %v1245
      %v1378 = vmul.f32 %v1370, %v1249
      %v1379 = vmul.f32 %v1371, %v1245
      %v1380 = vmul.f32 %v1372, %v1249
      %v1381 = vpack.c.bf16 %v1375, %v1373
      %v1382 = vpack.c.bf16 %v1376, %v1374
      %v1383 = vpack.c.bf16 %v1379, %v1377
      %v1384 = vpack.c.bf16 %v1380, %v1378
      %v1389 = vunpack.c.l.b16 %v1381
      %v1390 = vunpack.c.l.b16 %v1382
      %v1391 = vunpack.c.h.b16 %v1381
      %v1392 = vunpack.c.h.b16 %v1382
      %v1393 = vunpack.c.l.b16 %v1383
      %v1394 = vunpack.c.l.b16 %v1384
      %v1395 = vunpack.c.h.b16 %v1383
      %v1396 = vunpack.c.h.b16 %v1384
      %v1397 = vpack.c.b16 %v1390, %v1389
      %v1398 = vpack.c.b16 %v1392, %v1391
      %v1399 = vpack.c.b16 %v1394, %v1393
      %v1400 = vpack.c.b16 %v1396, %v1395
      %vm1405 = vcmask 1043456
      %vm1406 = vcmask 785412
      %vm1407 = vmor %vm1406, %vm1405
      %1408 = vst.msk [vmem:[#allocation2 + $0x4] sm:$0xff] %vm1407, %v1397
      %1409 = vst.msk [vmem:[#allocation2 + $0x10] sm:$0xff] %vm1407, %v1398
      %1410 = vst.msk [vmem:[#allocation2 + $0x1c] sm:$0xff] %vm1407, %v1399
      %1411 = vst.msk [vmem:[#allocation2 + $0x28] sm:$0xff] %vm1407, %v1400
      %v1412 = vld [vmem:[#allocation2] sm:$0xff]
      %v1413 = vld [vmem:[#allocation2 + $0x8] sm:$0xf]
      %v1414 = vld [vmem:[#allocation2 + $0xc] sm:$0xff]
      %v1415 = vld [vmem:[#allocation2 + $0x14] sm:$0xf]
      %v1416 = vld [vmem:[#allocation2 + $0x18] sm:$0xff]
      %v1417 = vld [vmem:[#allocation2 + $0x20] sm:$0xf]
      %v1418 = vld [vmem:[#allocation2 + $0x24] sm:$0xff]
      %v1419 = vld [vmem:[#allocation2 + $0x2c] sm:$0xf]
      %v1420 = vld [vmem:[%s5] sm:$0xf]
      %s1421 = scalar_lea.vmem %s5, 4
      %v1422 = vld [vmem:[%s1421] sm:$0xf]
      %v1431 = vunpack.c.l.b16 %v1412
      %v1432 = vunpack.c.h.b16 %v1412
      %v1433 = vunpack.c.l.b16 %v1413
      %v1434 = vunpack.c.l.b16 %v1414
      %v1435 = vunpack.c.h.b16 %v1414
      %v1436 = vunpack.c.l.b16 %v1415
      %v1437 = vunpack.c.l.b16 %v1416
      %v1438 = vunpack.c.h.b16 %v1416
      %v1439 = vunpack.c.l.b16 %v1417
      %v1440 = vunpack.c.l.b16 %v1418
      %v1441 = vunpack.c.h.b16 %v1418
      %v1442 = vunpack.c.l.b16 %v1419
      %v1443 = vpack.c.b16 %v1434, %v1431
      %v1444 = vpack.c.b16 %v1435, %v1432
      %v1445 = vpack.c.b16 %v1436, %v1433
      %v1446 = vpack.c.b16 %v1440, %v1437
      %v1447 = vpack.c.b16 %v1441, %v1438
      %v1448 = vpack.c.b16 %v1442, %v1439
      %1449 = vrot.lane.b32.xlu0 %v1443, 16
      %v1450 = vpop.permute.xlu0 %1449
      %1451 = vrot.lane.b32.xlu0 %v1444, 16
      %v1452 = vpop.permute.xlu0 %1451
      %1453 = vrot.lane.b32.xlu0 %v1445, 16
      %v1454 = vpop.permute.xlu0 %1453
      %1455 = vrot.lane.b32.xlu0 %v1446, 16
      %v1456 = vpop.permute.xlu0 %1455
      %1457 = vrot.lane.b32.xlu0 %v1447, 16
      %v1458 = vpop.permute.xlu0 %1457
      %1459 = vrot.lane.b32.xlu0 %v1448, 16
      %v1460 = vpop.permute.xlu0 %1459
      %vm1461 = vcmask 130048
      %v1462 = vsel %vm1461, %v1450, %v1452
      %v1463 = vsel %vm1461, %v1452, %v1454
      %v1464 = vsel %vm1461, %v1456, %v1458
      %v1465 = vsel %vm1461, %v1458, %v1460
      %v1471 = vsel %vm374, %v1422, 0
      %1473 = vmatprep.subr.bf16.mxu0 0
      %1474 = vmatpush1.bf16.msra.mxu0 0
      %1475 = vmatprep.subr.bf16.mxu0 0
      %1476 = vmatpush1.bf16.msra.mxu0 0
      %1477 = vmatprep.subr.bf16.mxu0 0
      %1478 = vmatpush1.bf16.msra.mxu0 0
      %1479 = vmatprep.subr.bf16.mxu0 0
      %1480 = vmatpush1.bf16.msra.mxu0 0
      %1481 = vmatprep.subr.bf16.mxu0 0
      %1482 = vmatpush1.bf16.msra.mxu0 0
      %1483 = vmatprep.subr.bf16.mxu0 0
      %1484 = vmatpush1.bf16.msra.mxu0 0
      %1485 = vmatprep.subr.bf16.mxu0 %v1465
      %1486 = vmatpush1.bf16.msra.mxu0 %v1464
      %1487 = vmatprep.subr.bf16.mxu0 %v1463
      %1488 = vmatpush1.bf16.msra.mxu0 %v1462
      %1489 = vmatprep.subr.bf16.mxu0 0
      %1490 = vmatpush2.bf16.msra.mxu0 0
      %1491 = vmatprep.subr.bf16.mxu0 0
      %1492 = vmatpush2.bf16.msra.mxu0 0
      %1493 = vmatprep.subr.bf16.mxu0 0
      %1494 = vmatpush2.bf16.msra.mxu0 0
      %1495 = vmatprep.subr.bf16.mxu0 0
      %1496 = vmatpush2.bf16.msra.mxu0 0
      %1497 = vmatprep.subr.bf16.mxu0 0
      %1498 = vmatpush2.bf16.msra.mxu0 0
      %1499 = vmatprep.subr.bf16.mxu0 0
      %1500 = vmatpush2.bf16.msra.mxu0 0
      %1501 = vmatprep.subr.bf16.mxu0 0
      %1502 = vmatpush2.bf16.msra.mxu0 0
      %1503 = vmatprep.subr.bf16.mxu0 0
      %1504 = vmatpush2.bf16.msra.mxu0 0
      %1505 = vmatprep.mubr.bf16.mxu0 0
      %1506 = vmatmul.mubr.bf16.gmra.mxu0 %v1471
      %v1507 = vpop.f32.mrf.mxu0
      %v1508 = vadd.f32 0.0, %v1507
      %v1509 = vpop.f32.mrf.mxu0
      %v1510 = vadd.f32 0.0, %v1509
      %v1511 = vpop.f32.mrf.mxu0
      %v1512 = vpop.f32.mrf.mxu0
      %1513 = vdwg.mxu0
      %1514 = vrot.lane.b32.xlu0 %v1443, 17
      %v1515 = vpop.permute.xlu0 %1514
      %1516 = vrot.lane.b32.xlu0 %v1444, 17
      %v1517 = vpop.permute.xlu0 %1516
      %1518 = vrot.lane.b32.xlu0 %v1445, 17
      %v1519 = vpop.permute.xlu0 %1518
      %1520 = vrot.lane.b32.xlu0 %v1446, 17
      %v1521 = vpop.permute.xlu0 %1520
      %1522 = vrot.lane.b32.xlu0 %v1447, 17
      %v1523 = vpop.permute.xlu0 %1522
      %1524 = vrot.lane.b32.xlu0 %v1448, 17
      %v1525 = vpop.permute.xlu0 %1524
      %vm1526 = vcmask 138240
      %v1527 = vsel %vm1526, %v1515, %v1517
      %v1528 = vsel %vm1526, %v1517, %v1519
      %v1529 = vsel %vm1526, %v1521, %v1523
      %v1530 = vsel %vm1526, %v1523, %v1525
      %v1536 = vsel %vm374, %v1420, 0
      %1538 = vmatprep.subr.bf16.mxu0 0
      %1539 = vmatpush1.bf16.msra.mxu0 0
      %1540 = vmatprep.subr.bf16.mxu0 0
      %1541 = vmatpush1.bf16.msra.mxu0 0
      %1542 = vmatprep.subr.bf16.mxu0 0
      %1543 = vmatpush1.bf16.msra.mxu0 0
      %1544 = vmatprep.subr.bf16.mxu0 0
      %1545 = vmatpush1.bf16.msra.mxu0 0
      %1546 = vmatprep.subr.bf16.mxu0 0
      %1547 = vmatpush1.bf16.msra.mxu0 0
      %1548 = vmatprep.subr.bf16.mxu0 0
      %1549 = vmatpush1.bf16.msra.mxu0 0
      %1550 = vmatprep.subr.bf16.mxu0 %v1530
      %1551 = vmatpush1.bf16.msra.mxu0 %v1529
      %1552 = vmatprep.subr.bf16.mxu0 %v1528
      %1553 = vmatpush1.bf16.msra.mxu0 %v1527
      %1554 = vmatprep.subr.bf16.mxu0 0
      %1555 = vmatpush2.bf16.msra.mxu0 0
      %1556 = vmatprep.subr.bf16.mxu0 0
      %1557 = vmatpush2.bf16.msra.mxu0 0
      %1558 = vmatprep.subr.bf16.mxu0 0
      %1559 = vmatpush2.bf16.msra.mxu0 0
      %1560 = vmatprep.subr.bf16.mxu0 0
      %1561 = vmatpush2.bf16.msra.mxu0 0
      %1562 = vmatprep.subr.bf16.mxu0 0
      %1563 = vmatpush2.bf16.msra.mxu0 0
      %1564 = vmatprep.subr.bf16.mxu0 0
      %1565 = vmatpush2.bf16.msra.mxu0 0
      %1566 = vmatprep.subr.bf16.mxu0 0
      %1567 = vmatpush2.bf16.msra.mxu0 0
      %1568 = vmatprep.subr.bf16.mxu0 0
      %1569 = vmatpush2.bf16.msra.mxu0 0
      %1570 = vmatprep.mubr.bf16.mxu0 0
      %1571 = vmatmul.mubr.bf16.gmra.mxu0 %v1536
      %v1572 = vpop.f32.mrf.mxu0
      %v1573 = vadd.f32 %v1508, %v1572
      %v1574 = vpop.f32.mrf.mxu0
      %v1575 = vadd.f32 %v1510, %v1574
      %v1576 = vpop.f32.mrf.mxu0
      %v1577 = vpop.f32.mrf.mxu0
      %1578 = vdwg.mxu0
      %s1579 = scalar_lea.vmem %s5, 8
      %v1580 = vld [vmem:[%s1579] sm:$0xf]
      %1581 = vrot.lane.b32.xlu0 %v1443, 15
      %v1582 = vpop.permute.xlu0 %1581
      %1583 = vrot.lane.b32.xlu0 %v1444, 15
      %v1584 = vpop.permute.xlu0 %1583
      %1585 = vrot.lane.b32.xlu0 %v1445, 15
      %v1586 = vpop.permute.xlu0 %1585
      %1587 = vrot.lane.b32.xlu0 %v1446, 15
      %v1588 = vpop.permute.xlu0 %1587
      %1589 = vrot.lane.b32.xlu0 %v1447, 15
      %v1590 = vpop.permute.xlu0 %1589
      %1591 = vrot.lane.b32.xlu0 %v1448, 15
      %v1592 = vpop.permute.xlu0 %1591
      %vm1593 = vcmask 121856
      %v1594 = vsel %vm1593, %v1582, %v1584
      %v1595 = vsel %vm1593, %v1584, %v1586
      %v1596 = vsel %vm1593, %v1588, %v1590
      %v1597 = vsel %vm1593, %v1590, %v1592
      %v1603 = vsel %vm374, %v1580, 0
      %1605 = vmatprep.subr.bf16.mxu0 0
      %1606 = vmatpush1.bf16.msra.mxu0 0
      %1607 = vmatprep.subr.bf16.mxu0 0
      %1608 = vmatpush1.bf16.msra.mxu0 0
      %1609 = vmatprep.subr.bf16.mxu0 0
      %1610 = vmatpush1.bf16.msra.mxu0 0
      %1611 = vmatprep.subr.bf16.mxu0 0
      %1612 = vmatpush1.bf16.msra.mxu0 0
      %1613 = vmatprep.subr.bf16.mxu0 0
      %1614 = vmatpush1.bf16.msra.mxu0 0
      %1615 = vmatprep.subr.bf16.mxu0 0
      %1616 = vmatpush1.bf16.msra.mxu0 0
      %1617 = vmatprep.subr.bf16.mxu0 %v1597
      %1618 = vmatpush1.bf16.msra.mxu0 %v1596
      %1619 = vmatprep.subr.bf16.mxu0 %v1595
      %1620 = vmatpush1.bf16.msra.mxu0 %v1594
      %1621 = vmatprep.subr.bf16.mxu0 0
      %1622 = vmatpush2.bf16.msra.mxu0 0
      %1623 = vmatprep.subr.bf16.mxu0 0
      %1624 = vmatpush2.bf16.msra.mxu0 0
      %1625 = vmatprep.subr.bf16.mxu0 0
      %1626 = vmatpush2.bf16.msra.mxu0 0
      %1627 = vmatprep.subr.bf16.mxu0 0
      %1628 = vmatpush2.bf16.msra.mxu0 0
      %1629 = vmatprep.subr.bf16.mxu0 0
      %1630 = vmatpush2.bf16.msra.mxu0 0
      %1631 = vmatprep.subr.bf16.mxu0 0
      %1632 = vmatpush2.bf16.msra.mxu0 0
      %1633 = vmatprep.subr.bf16.mxu0 0
      %1634 = vmatpush2.bf16.msra.mxu0 0
      %1635 = vmatprep.subr.bf16.mxu0 0
      %1636 = vmatpush2.bf16.msra.mxu0 0
      %1637 = vmatprep.mubr.bf16.mxu0 0
      %1638 = vmatmul.mubr.bf16.gmra.mxu0 %v1603
      %v1639 = vpop.f32.mrf.mxu0
      %v1640 = vadd.f32 0.0, %v1639
      %v1641 = vpop.f32.mrf.mxu0
      %v1642 = vadd.f32 0.0, %v1641
      %v1643 = vpop.f32.mrf.mxu0
      %v1644 = vpop.f32.mrf.mxu0
      %1645 = vdwg.mxu0
      %v1646 = vadd.f32 %v1573, %v1640
      %v1647 = vadd.f32 %v1575, %v1642
      %s1648 = scalar_lea.vmem %s5, 12
      %v1649 = vld [vmem:[%s1648] sm:$0xf]
      %1650 = vrot.lane.b32.xlu0 %v1443, 1
      %v1651 = vpop.permute.xlu0 %1650
      %1652 = vrot.lane.b32.xlu0 %v1444, 1
      %v1653 = vpop.permute.xlu0 %1652
      %1654 = vrot.lane.b32.xlu0 %v1445, 1
      %v1655 = vpop.permute.xlu0 %1654
      %1656 = vrot.lane.b32.xlu0 %v1446, 1
      %v1657 = vpop.permute.xlu0 %1656
      %1658 = vrot.lane.b32.xlu0 %v1447, 1
      %v1659 = vpop.permute.xlu0 %1658
      %1660 = vrot.lane.b32.xlu0 %v1448, 1
      %v1661 = vpop.permute.xlu0 %1660
      %vm1662 = vcmask 7168
      %v1663 = vsel %vm1662, %v1651, %v1653
      %v1664 = vsel %vm1662, %v1653, %v1655
      %v1665 = vsel %vm1662, %v1657, %v1659
      %v1666 = vsel %vm1662, %v1659, %v1661
      %v1672 = vsel %vm374, %v1649, 0
      %1674 = vmatprep.subr.bf16.mxu0 0
      %1675 = vmatpush1.bf16.msra.mxu0 0
      %1676 = vmatprep.subr.bf16.mxu0 0
      %1677 = vmatpush1.bf16.msra.mxu0 0
      %1678 = vmatprep.subr.bf16.mxu0 0
      %1679 = vmatpush1.bf16.msra.mxu0 0
      %1680 = vmatprep.subr.bf16.mxu0 0
      %1681 = vmatpush1.bf16.msra.mxu0 0
      %1682 = vmatprep.subr.bf16.mxu0 0
      %1683 = vmatpush1.bf16.msra.mxu0 0
      %1684 = vmatprep.subr.bf16.mxu0 0
      %1685 = vmatpush1.bf16.msra.mxu0 0
      %1686 = vmatprep.subr.bf16.mxu0 %v1666
      %1687 = vmatpush1.bf16.msra.mxu0 %v1665
      %1688 = vmatprep.subr.bf16.mxu0 %v1664
      %1689 = vmatpush1.bf16.msra.mxu0 %v1663
      %1690 = vmatprep.subr.bf16.mxu0 0
      %1691 = vmatpush2.bf16.msra.mxu0 0
      %1692 = vmatprep.subr.bf16.mxu0 0
      %1693 = vmatpush2.bf16.msra.mxu0 0
      %1694 = vmatprep.subr.bf16.mxu0 0
      %1695 = vmatpush2.bf16.msra.mxu0 0
      %1696 = vmatprep.subr.bf16.mxu0 0
      %1697 = vmatpush2.bf16.msra.mxu0 0
      %1698 = vmatprep.subr.bf16.mxu0 0
      %1699 = vmatpush2.bf16.msra.mxu0 0
      %1700 = vmatprep.subr.bf16.mxu0 0
      %1701 = vmatpush2.bf16.msra.mxu0 0
      %1702 = vmatprep.subr.bf16.mxu0 0
      %1703 = vmatpush2.bf16.msra.mxu0 0
      %1704 = vmatprep.subr.bf16.mxu0 0
      %1705 = vmatpush2.bf16.msra.mxu0 0
      %1706 = vmatprep.mubr.bf16.mxu0 0
      %1707 = vmatmul.mubr.bf16.gmra.mxu0 %v1672
      %v1708 = vpop.f32.mrf.mxu0
      %v1709 = vadd.f32 0.0, %v1708
      %v1710 = vpop.f32.mrf.mxu0
      %v1711 = vadd.f32 0.0, %v1710
      %v1712 = vpop.f32.mrf.mxu0
      %v1713 = vpop.f32.mrf.mxu0
      %1714 = vdwg.mxu0
      %v1715 = vadd.f32 %v1646, %v1709
      %v1716 = vadd.f32 %v1647, %v1711
      %s1717 = scalar_lea.vmem %s5, 16
      %v1718 = vld [vmem:[%s1717] sm:$0xf]
      %v1724 = vsel %vm374, %v1718, 0
      %1726 = vmatprep.subr.bf16.mxu0 0
      %1727 = vmatpush1.bf16.msra.mxu0 0
      %1728 = vmatprep.subr.bf16.mxu0 0
      %1729 = vmatpush1.bf16.msra.mxu0 0
      %1730 = vmatprep.subr.bf16.mxu0 0
      %1731 = vmatpush1.bf16.msra.mxu0 0
      %1732 = vmatprep.subr.bf16.mxu0 0
      %1733 = vmatpush1.bf16.msra.mxu0 0
      %1734 = vmatprep.subr.bf16.mxu0 0
      %1735 = vmatpush1.bf16.msra.mxu0 0
      %1736 = vmatprep.subr.bf16.mxu0 0
      %1737 = vmatpush1.bf16.msra.mxu0 0
      %1738 = vmatprep.subr.bf16.mxu0 %v1448
      %1739 = vmatpush1.bf16.msra.mxu0 %v1447
      %1740 = vmatprep.subr.bf16.mxu0 %v1445
      %1741 = vmatpush1.bf16.msra.mxu0 %v1444
      %1742 = vmatprep.subr.bf16.mxu0 0
      %1743 = vmatpush2.bf16.msra.mxu0 0
      %1744 = vmatprep.subr.bf16.mxu0 0
      %1745 = vmatpush2.bf16.msra.mxu0 0
      %1746 = vmatprep.subr.bf16.mxu0 0
      %1747 = vmatpush2.bf16.msra.mxu0 0
      %1748 = vmatprep.subr.bf16.mxu0 0
      %1749 = vmatpush2.bf16.msra.mxu0 0
      %1750 = vmatprep.subr.bf16.mxu0 0
      %1751 = vmatpush2.bf16.msra.mxu0 0
      %1752 = vmatprep.subr.bf16.mxu0 0
      %1753 = vmatpush2.bf16.msra.mxu0 0
      %1754 = vmatprep.subr.bf16.mxu0 0
      %1755 = vmatpush2.bf16.msra.mxu0 0
      %1756 = vmatprep.subr.bf16.mxu0 0
      %1757 = vmatpush2.bf16.msra.mxu0 0
      %1758 = vmatprep.mubr.bf16.mxu0 0
      %1759 = vmatmul.mubr.bf16.gmra.mxu0 %v1724
      %v1760 = vpop.f32.mrf.mxu0
      %v1761 = vadd.f32 0.0, %v1760
      %v1762 = vpop.f32.mrf.mxu0
      %v1763 = vadd.f32 0.0, %v1762
      %v1764 = vpop.f32.mrf.mxu0
      %v1765 = vpop.f32.mrf.mxu0
      %1766 = vdwg.mxu0
      %v1767 = vadd.f32 %v1715, %v1761
      %v1768 = vadd.f32 %v1716, %v1763
      %s1769 = scalar_lea.vmem %s5, 20
      %v1770 = vld [vmem:[%s1769] sm:$0xf]
      %1771 = vrot.lane.b32.xlu0 %v1444, 127
      %v1772 = vpop.permute.xlu0 %1771
      %1773 = vrot.lane.b32.xlu0 %v1445, 127
      %v1774 = vpop.permute.xlu0 %1773
      %1775 = vrot.lane.b32.xlu0 %v1447, 127
      %v1776 = vpop.permute.xlu0 %1775
      %1777 = vrot.lane.b32.xlu0 %v1448, 127
      %v1778 = vpop.permute.xlu0 %1777
      %v1779 = vsel %vm367, %v1772, %v1774
      %v1780 = vsel %vm367, %v1776, %v1778
      %v1786 = vsel %vm374, %v1770, 0
      %1788 = vmatprep.subr.bf16.mxu0 0
      %1789 = vmatpush1.bf16.msra.mxu0 0
      %1790 = vmatprep.subr.bf16.mxu0 0
      %1791 = vmatpush1.bf16.msra.mxu0 0
      %1792 = vmatprep.subr.bf16.mxu0 0
      %1793 = vmatpush1.bf16.msra.mxu0 0
      %1794 = vmatprep.subr.bf16.mxu0 0
      %1795 = vmatpush1.bf16.msra.mxu0 0
      %1796 = vmatprep.subr.bf16.mxu0 0
      %1797 = vmatpush1.bf16.msra.mxu0 0
      %1798 = vmatprep.subr.bf16.mxu0 0
      %1799 = vmatpush1.bf16.msra.mxu0 0
      %1800 = vmatprep.subr.bf16.mxu0 %v1778
      %1801 = vmatpush1.bf16.msra.mxu0 %v1780
      %1802 = vmatprep.subr.bf16.mxu0 %v1774
      %1803 = vmatpush1.bf16.msra.mxu0 %v1779
      %1804 = vmatprep.subr.bf16.mxu0 0
      %1805 = vmatpush2.bf16.msra.mxu0 0
      %1806 = vmatprep.subr.bf16.mxu0 0
      %1807 = vmatpush2.bf16.msra.mxu0 0
      %1808 = vmatprep.subr.bf16.mxu0 0
      %1809 = vmatpush2.bf16.msra.mxu0 0
      %1810 = vmatprep.subr.bf16.mxu0 0
      %1811 = vmatpush2.bf16.msra.mxu0 0
      %1812 = vmatprep.subr.bf16.mxu0 0
      %1813 = vmatpush2.bf16.msra.mxu0 0
      %1814 = vmatprep.subr.bf16.mxu0 0
      %1815 = vmatpush2.bf16.msra.mxu0 0
      %1816 = vmatprep.subr.bf16.mxu0 0
      %1817 = vmatpush2.bf16.msra.mxu0 0
      %1818 = vmatprep.subr.bf16.mxu0 0
      %1819 = vmatpush2.bf16.msra.mxu0 0
      %1820 = vmatprep.mubr.bf16.mxu0 0
      %1821 = vmatmul.mubr.bf16.gmra.mxu0 %v1786
      %v1822 = vpop.f32.mrf.mxu0
      %v1823 = vadd.f32 0.0, %v1822
      %v1824 = vpop.f32.mrf.mxu0
      %v1825 = vadd.f32 0.0, %v1824
      %v1826 = vpop.f32.mrf.mxu0
      %v1827 = vpop.f32.mrf.mxu0
      %1828 = vdwg.mxu0
      %v1829 = vadd.f32 %v1767, %v1823
      %v1830 = vadd.f32 %v1768, %v1825
      %s1831 = scalar_lea.vmem %s5, 24
      %v1832 = vld [vmem:[%s1831] sm:$0xf]
      %1833 = vrot.lane.b32.xlu0 %v1444, 113
      %v1834 = vpop.permute.xlu0 %1833
      %1835 = vrot.lane.b32.xlu0 %v1445, 113
      %v1836 = vpop.permute.xlu0 %1835
      %1837 = vrot.lane.b32.xlu0 %v1447, 113
      %v1838 = vpop.permute.xlu0 %1837
      %1839 = vrot.lane.b32.xlu0 %v1448, 113
      %v1840 = vpop.permute.xlu0 %1839
      %vm1841 = vcmask 924672
      %v1842 = vsel %vm1841, %v1834, %v1836
      %v1843 = vsel %vm1841, %v1838, %v1840
      %v1849 = vsel %vm374, %v1832, 0
      %1851 = vmatprep.subr.bf16.mxu0 0
      %1852 = vmatpush1.bf16.msra.mxu0 0
      %1853 = vmatprep.subr.bf16.mxu0 0
      %1854 = vmatpush1.bf16.msra.mxu0 0
      %1855 = vmatprep.subr.bf16.mxu0 0
      %1856 = vmatpush1.bf16.msra.mxu0 0
      %1857 = vmatprep.subr.bf16.mxu0 0
      %1858 = vmatpush1.bf16.msra.mxu0 0
      %1859 = vmatprep.subr.bf16.mxu0 0
      %1860 = vmatpush1.bf16.msra.mxu0 0
      %1861 = vmatprep.subr.bf16.mxu0 0
      %1862 = vmatpush1.bf16.msra.mxu0 0
      %1863 = vmatprep.subr.bf16.mxu0 %v1840
      %1864 = vmatpush1.bf16.msra.mxu0 %v1843
      %1865 = vmatprep.subr.bf16.mxu0 %v1836
      %1866 = vmatpush1.bf16.msra.mxu0 %v1842
      %1867 = vmatprep.subr.bf16.mxu0 0
      %1868 = vmatpush2.bf16.msra.mxu0 0
      %1869 = vmatprep.subr.bf16.mxu0 0
      %1870 = vmatpush2.bf16.msra.mxu0 0
      %1871 = vmatprep.subr.bf16.mxu0 0
      %1872 = vmatpush2.bf16.msra.mxu0 0
      %1873 = vmatprep.subr.bf16.mxu0 0
      %1874 = vmatpush2.bf16.msra.mxu0 0
      %1875 = vmatprep.subr.bf16.mxu0 0
      %1876 = vmatpush2.bf16.msra.mxu0 0
      %1877 = vmatprep.subr.bf16.mxu0 0
      %1878 = vmatpush2.bf16.msra.mxu0 0
      %1879 = vmatprep.subr.bf16.mxu0 0
      %1880 = vmatpush2.bf16.msra.mxu0 0
      %1881 = vmatprep.subr.bf16.mxu0 0
      %1882 = vmatpush2.bf16.msra.mxu0 0
      %1883 = vmatprep.mubr.bf16.mxu0 0
      %1884 = vmatmul.mubr.bf16.gmra.mxu0 %v1849
      %v1885 = vpop.f32.mrf.mxu0
      %v1886 = vadd.f32 0.0, %v1885
      %v1887 = vpop.f32.mrf.mxu0
      %v1888 = vadd.f32 0.0, %v1887
      %v1889 = vpop.f32.mrf.mxu0
      %v1890 = vpop.f32.mrf.mxu0
      %1891 = vdwg.mxu0
      %v1892 = vadd.f32 %v1829, %v1886
      %v1893 = vadd.f32 %v1830, %v1888
      %s1894 = scalar_lea.vmem %s5, 28
      %v1895 = vld [vmem:[%s1894] sm:$0xf]
      %1896 = vrot.lane.b32.xlu0 %v1444, 112
      %v1897 = vpop.permute.xlu0 %1896
      %1898 = vrot.lane.b32.xlu0 %v1445, 112
      %v1899 = vpop.permute.xlu0 %1898
      %1900 = vrot.lane.b32.xlu0 %v1447, 112
      %v1901 = vpop.permute.xlu0 %1900
      %1902 = vrot.lane.b32.xlu0 %v1448, 112
      %v1903 = vpop.permute.xlu0 %1902
      %v1904 = vsel %vm627, %v1897, %v1899
      %v1905 = vsel %vm627, %v1901, %v1903
      %v1911 = vsel %vm374, %v1895, 0
      %1913 = vmatprep.subr.bf16.mxu0 0
      %1914 = vmatpush1.bf16.msra.mxu0 0
      %1915 = vmatprep.subr.bf16.mxu0 0
      %1916 = vmatpush1.bf16.msra.mxu0 0
      %1917 = vmatprep.subr.bf16.mxu0 0
      %1918 = vmatpush1.bf16.msra.mxu0 0
      %1919 = vmatprep.subr.bf16.mxu0 0
      %1920 = vmatpush1.bf16.msra.mxu0 0
      %1921 = vmatprep.subr.bf16.mxu0 0
      %1922 = vmatpush1.bf16.msra.mxu0 0
      %1923 = vmatprep.subr.bf16.mxu0 0
      %1924 = vmatpush1.bf16.msra.mxu0 0
      %1925 = vmatprep.subr.bf16.mxu0 %v1903
      %1926 = vmatpush1.bf16.msra.mxu0 %v1905
      %1927 = vmatprep.subr.bf16.mxu0 %v1899
      %1928 = vmatpush1.bf16.msra.mxu0 %v1904
      %1929 = vmatprep.subr.bf16.mxu0 0
      %1930 = vmatpush2.bf16.msra.mxu0 0
      %1931 = vmatprep.subr.bf16.mxu0 0
      %1932 = vmatpush2.bf16.msra.mxu0 0
      %1933 = vmatprep.subr.bf16.mxu0 0
      %1934 = vmatpush2.bf16.msra.mxu0 0
      %1935 = vmatprep.subr.bf16.mxu0 0
      %1936 = vmatpush2.bf16.msra.mxu0 0
      %1937 = vmatprep.subr.bf16.mxu0 0
      %1938 = vmatpush2.bf16.msra.mxu0 0
      %1939 = vmatprep.subr.bf16.mxu0 0
      %1940 = vmatpush2.bf16.msra.mxu0 0
      %1941 = vmatprep.subr.bf16.mxu0 0
      %1942 = vmatpush2.bf16.msra.mxu0 0
      %1943 = vmatprep.subr.bf16.mxu0 0
      %1944 = vmatpush2.bf16.msra.mxu0 0
      %1945 = vmatprep.mubr.bf16.mxu0 0
      %1946 = vmatmul.mubr.bf16.gmra.mxu0 %v1911
      %v1947 = vpop.f32.mrf.mxu0
      %v1948 = vadd.f32 0.0, %v1947
      %v1949 = vpop.f32.mrf.mxu0
      %v1950 = vadd.f32 0.0, %v1949
      %v1951 = vpop.f32.mrf.mxu0
      %v1952 = vpop.f32.mrf.mxu0
      %1953 = vdwg.mxu0
      %v1954 = vadd.f32 %v1892, %v1948
      %v1955 = vadd.f32 %v1893, %v1950
      %s1956 = scalar_lea.vmem %s5, 32
      %v1957 = vld [vmem:[%s1956] sm:$0xf]
      %1958 = vrot.lane.b32.xlu0 %v1444, 111
      %v1959 = vpop.permute.xlu0 %1958
      %1960 = vrot.lane.b32.xlu0 %v1445, 111
      %v1961 = vpop.permute.xlu0 %1960
      %1962 = vrot.lane.b32.xlu0 %v1447, 111
      %v1963 = vpop.permute.xlu0 %1962
      %1964 = vrot.lane.b32.xlu0 %v1448, 111
      %v1965 = vpop.permute.xlu0 %1964
      %v1966 = vsel %vm724, %v1959, %v1961
      %v1967 = vsel %vm724, %v1963, %v1965
      %v1973 = vsel %vm374, %v1957, 0
      %1975 = vmatprep.subr.bf16.mxu0 0
      %1976 = vmatpush1.bf16.msra.mxu0 0
      %1977 = vmatprep.subr.bf16.mxu0 0
      %1978 = vmatpush1.bf16.msra.mxu0 0
      %1979 = vmatprep.subr.bf16.mxu0 0
      %1980 = vmatpush1.bf16.msra.mxu0 0
      %1981 = vmatprep.subr.bf16.mxu0 0
      %1982 = vmatpush1.bf16.msra.mxu0 0
      %1983 = vmatprep.subr.bf16.mxu0 0
      %1984 = vmatpush1.bf16.msra.mxu0 0
      %1985 = vmatprep.subr.bf16.mxu0 0
      %1986 = vmatpush1.bf16.msra.mxu0 0
      %1987 = vmatprep.subr.bf16.mxu0 %v1965
      %1988 = vmatpush1.bf16.msra.mxu0 %v1967
      %1989 = vmatprep.subr.bf16.mxu0 %v1961
      %1990 = vmatpush1.bf16.msra.mxu0 %v1966
      %1991 = vmatprep.subr.bf16.mxu0 0
      %1992 = vmatpush2.bf16.msra.mxu0 0
      %1993 = vmatprep.subr.bf16.mxu0 0
      %1994 = vmatpush2.bf16.msra.mxu0 0
      %1995 = vmatprep.subr.bf16.mxu0 0
      %1996 = vmatpush2.bf16.msra.mxu0 0
      %1997 = vmatprep.subr.bf16.mxu0 0
      %1998 = vmatpush2.bf16.msra.mxu0 0
      %1999 = vmatprep.subr.bf16.mxu0 0
      %2000 = vmatpush2.bf16.msra.mxu0 0
      %2001 = vmatprep.subr.bf16.mxu0 0
      %2002 = vmatpush2.bf16.msra.mxu0 0
      %2003 = vmatprep.subr.bf16.mxu0 0
      %2004 = vmatpush2.bf16.msra.mxu0 0
      %2005 = vmatprep.subr.bf16.mxu0 0
      %2006 = vmatpush2.bf16.msra.mxu0 0
      %2007 = vmatprep.mubr.bf16.mxu0 0
      %2008 = vmatmul.mubr.bf16.gmra.mxu0 %v1973
      %v2009 = vpop.f32.mrf.mxu0
      %v2010 = vadd.f32 0.0, %v2009
      %v2011 = vpop.f32.mrf.mxu0
      %v2012 = vadd.f32 0.0, %v2011
      %v2013 = vpop.f32.mrf.mxu0
      %v2014 = vpop.f32.mrf.mxu0
      %2015 = vdwg.mxu0
      %v2016 = vadd.f32 %v1954, %v2010
      %v2017 = vadd.f32 %v1955, %v2012
      %v2018 = vld [vmem:[%s6] sm:$0xff]
      %2020 = vset.pattern.permute.xlu0 0
      %2021 = vperm.xlu0 %2020, %v2018
      %v2022 = vpop.permute.xlu0 %2021
      %v2024 = vadd.f32 %v2016, %v2022
      %v2025 = vadd.f32 %v2017, %v2022
      %v2026 = vrot.slane %v2024, 4
      %v2027 = vmax.f32 %v2024, %v2026
      %v2028 = vrot.slane %v2027, 2
      %v2029 = vmax.f32 %v2027, %v2028
      %v2030 = vrot.slane %v2029, 1
      %v2031 = vmax.f32 %v2029, %v2030
      %v2032 = vsel %vm1260, %v2025, -inf
      %v2033 = vrot.slane %v2032, 4
      %v2034 = vmax.f32 %v2032, %v2033
      %v2035 = vrot.slane %v2034, 2
      %v2036 = vmax.f32 %v2034, %v2035
      %v2037 = vrot.slane %v2036, 1
      %v2038 = vmax.f32 %v2036, %v2037
      %v2039 = vsub.f32 %v2024, %v2031
      %v2040 = vsub.f32 %v2025, %v2038
      %v2041 = vmul.f32 %v2039, 1.442695
      %v2042 = vpow.pop %v2041
      %v2043 = vmul.f32 %v2040, 1.442695
      %v2044 = vpow.pop %v2043
      %v2045 = vrot.slane %v2042, 4
      %v2046 = vadd.f32 %v2042, %v2045
      %v2047 = vrot.slane %v2046, 2
      %v2048 = vadd.f32 %v2046, %v2047
      %v2049 = vrot.slane %v2048, 1
      %v2050 = vadd.f32 %v2048, %v2049
      %v2051 = vsel %vm1260, %v2044, 0.0
      %v2052 = vrot.slane %v2051, 4
      %v2053 = vadd.f32 %v2051, %v2052
      %v2054 = vrot.slane %v2053, 2
      %v2055 = vadd.f32 %v2053, %v2054
      %v2056 = vrot.slane %v2055, 1
      %v2057 = vadd.f32 %v2055, %v2056
      %v2058 = vrcp.pop %v2050
      %v2059 = vmul.f32 %v2042, %v2058
      %v2060 = vrcp.pop %v2057
      %v2061 = vmul.f32 %v2044, %v2060
      %2062 = vst [vmem:[%s305] sm:$0xff] %v2059
      %2063 = vst.msk [vmem:[%s305 + $0x8] sm:$0xff] %vm1260, %v2061
      %p2064 = scmp.lt.s32.totalorder %s19, 1
      %s2065 = scalar_select %p2064, %s19, 1
      %s2066 = smul.addr %s2065, 2
      %s2067 = smul.addr %s2066, 8
      %s2068 = scalar_lea.vmem %s8, %s2067
      // Predicated region
      $region53: #{single_adversery_forward.1} parent=51 // pred_check
        %p2069 = pneg %p210
      $region54: #{single_adversery_forward.1} parent=51 // pred_check_branch
        %2071 = sbr.rel (%p2069) target = $region56
      $region55: #{single_adversery_forward.1} parent=51 // pred_region
        _
      $region56: #{single_adversery_forward.1} parent=51 // pred_fallthru
        _
    $region52: #{single_adversery_forward.1} parent=5 // pred_fallthru
      _
    %p2072 = scmp.le.s32.totalorder 2, %s14
    // Predicated region
    $region57: #{single_adversery_forward.1} parent=5 // pred_check
      %p2073 = pneg %p2072
    $region58: #{single_adversery_forward.1} parent=5 // pred_check_branch
      %2075 = sbr.rel (%p2073) target = $region60
    $region59: #{single_adversery_forward.1} parent=5 // pred_region
      %s2076 = ssub.s32 %s14, 2
      // Predicated region
      $region61: #{single_adversery_forward.1} parent=59 // pred_check
        %p2077 = pneg %p216
      $region62: #{single_adversery_forward.1} parent=59 // pred_check_branch
        %2079 = sbr.rel (%p2077) target = $region64
      $region63: #{single_adversery_forward.1} parent=59 // pred_region
        %p2080 = scmp.lt.s32.totalorder %s20, 1
        %s2081 = scalar_select %p2080, %s20, 1
        %s2082 = smul.addr %s2081, 2
        %s2083 = smul.addr %s2082, 8
        %s2084 = scalar_lea.vmem %s8, %s2083
      $region64: #{single_adversery_forward.1} parent=59 // pred_fallthru
        _
    $region60: #{single_adversery_forward.1} parent=5 // pred_fallthru
      _
  $region6: #{single_adversery_forward.1} parent=0 // loop_footer
    %s18 = sadd.s32 1, %s14
  $region7: #{single_adversery_forward.1} parent=0 // loop_footer_branch
    %13 = sbr.rel target = $region3
  $region8: #{single_adversery_forward.1} parent=0 // loop_exit
    _

</llo_original>
